<compile_context>
chip_gen: v6e
topology: v6e:2x2x1
jax: 0.10.0
libtpu: 0.0.40
codegen_flags: <defaults>
</compile_context>

<pallas_src>
import functools

import jax
import jax.numpy as jnp
from jax.experimental import pallas as pl
from jax.experimental.pallas import tpu as pltpu


# ----------------------------- fused kernel -------------------------------- #

def _make_fused_kernel(n_head_layers: int, n_shared_layers: int):
    """Kernel for: head layers -> masked-residual backbone -> final + sigmoid.

    Kernel ref order:
      task_idx_ref (SMEM scalar prefetch, selection already done by index_maps),
      z_ref [tile, latent],
      (head_w_l [1, din, dout] bf16, head_b_l [1, 1, dout] f32) * n_head_layers,
      shared_w [L, W, W] bf16, shared_b [L, 1, W] f32,
      final_w [W, out] bf16, final_b [1, out] f32,
      out_ref [tile, out]
    """

    def kernel(task_ref, z_ref, *refs):
        del task_ref  # task selection is done by the head BlockSpec index_maps

        x = z_ref[...]                                    # f32 [tile, latent]
        idx = 0

        # Head: n_head_layers x (Linear -> ReLU); leading task dim is size 1.
        for _ in range(n_head_layers):
            w = refs[idx][0]                              # bf16 [din, dout]
            b = refs[idx + 1][0]                          # f32  [1, dout]
            idx += 2
            y = jnp.dot(x.astype(jnp.bfloat16), w,
                        preferred_element_type=jnp.float32) + b
            x = jnp.maximum(y, 0.0)

        # Shared backbone: (Linear -> ReLU) * mask + residual.
        # Mask is deterministically all-ones (see TODO above) -> elided.
        sw_ref = refs[idx]                                # bf16 [L, W, W]
        sb_ref = refs[idx + 1]                            # f32  [L, 1, W]
        idx += 2
        for layer in range(n_shared_layers):
            w = sw_ref[layer]                             # static index -> [W, W]
            b = sb_ref[layer]                             # [1, W]
            y = jnp.dot(x.astype(jnp.bfloat16), w,
                        preferred_element_type=jnp.float32) + b
            x = jnp.maximum(y, 0.0) + x                   # residual=True

        # Final layer + sigmoid (fused epilogue), lane-dense [tile, out] store.
        fw_ref = refs[idx]
        fb_ref = refs[idx + 1]
        o_ref = refs[idx + 2]
        y = jnp.dot(x.astype(jnp.bfloat16), fw_ref[...],
                    preferred_element_type=jnp.float32) + fb_ref[...]
        o_ref[...] = jax.nn.sigmoid(y)

    return kernel


# ------------------------------ fused wrapper ------------------------------ #

def _round_up(x: int, m: int) -> int:
    return ((x + m - 1) // m) * m


@functools.partial(jax.jit, static_argnames=("tile_b",))
def _fused_forward(task_idx, z, head_ws, head_bs, shared_w, shared_b,
                   final_w, final_b, *, tile_b: int = 256):
    """Single pallas_call for the whole decoder forward, tiled over batch.

    task_idx : i32  [1]                              (scalar-prefetched)
    z        : f32  [B, latent]
    head_ws  : tuple of bf16 [n_tasks, din_l, dout_l]
    head_bs  : tuple of f32  [n_tasks, 1, dout_l]
    shared_w : bf16 [L, W, W]     shared_b : f32 [L, 1, W]
    final_w  : bf16 [W, out_dim]  final_b  : f32 [1, out_dim]
    """
    n_head_layers = len(head_ws)
    n_shared_layers = shared_w.shape[0]
    batch, latent = z.shape
    out_dim = final_w.shape[1]

    # Batch tiling: tile rows so each MXU pass sees >= 256 rows when possible,
    # pad the (cheap) z rows to a whole number of tiles.
    tile = min(tile_b, _round_up(batch, 8))
    padded = _round_up(batch, tile)
    if padded != batch:
        z = jnp.pad(z, ((0, padded - batch), (0, 0)))
    n_tiles = padded // tile

    flat_inputs = [z]
    in_specs = [pl.BlockSpec((tile, latent), lambda b, t: (b, 0))]   # streamed

    # Task heads: block chosen by the prefetched task_idx scalar; the block
    # index is constant across the batch grid -> fetched once, VMEM-resident.
    for hw, hb in zip(head_ws, head_bs):
        flat_inputs += [hw, hb]
        in_specs.append(pl.BlockSpec((1,) + hw.shape[1:],
                                     lambda b, t: (t[0], 0, 0)))
        in_specs.append(pl.BlockSpec((1,) + hb.shape[1:],
                                     lambda b, t: (t[0], 0, 0)))

    # Shared backbone + final layer: constant index_maps -> VMEM-resident.
    flat_inputs += [shared_w, shared_b, final_w, final_b]
    in_specs += [
        pl.BlockSpec(shared_w.shape, lambda b, t: (0, 0, 0)),
        pl.BlockSpec(shared_b.shape, lambda b, t: (0, 0, 0)),
        pl.BlockSpec(final_w.shape, lambda b, t: (0, 0)),
        pl.BlockSpec(final_b.shape, lambda b, t: (0, 0)),
    ]
    out_spec = pl.BlockSpec((tile, out_dim), lambda b, t: (b, 0))

    # Advisory cost estimate for XLA's scheduler.
    flops = 0
    for hw in head_ws:
        flops += 2 * padded * hw.shape[1] * hw.shape[2]
    flops += 2 * padded * n_shared_layers * shared_w.shape[1] * shared_w.shape[2]
    flops += 2 * padded * final_w.shape[0] * final_w.shape[1]
    bytes_accessed = sum(int(a.size) * a.dtype.itemsize for a in flat_inputs)
    bytes_accessed += padded * out_dim * 4
    cost = pl.CostEstimate(flops=flops,
                           transcendentals=padded * out_dim,   # sigmoid exp
                           bytes_accessed=bytes_accessed)

    kernel = _make_fused_kernel(n_head_layers, n_shared_layers)

    out = pl.pallas_call(
        kernel,
        out_shape=jax.ShapeDtypeStruct((padded, out_dim), jnp.float32),
        grid_spec=pltpu.PrefetchScalarGridSpec(
            num_scalar_prefetch=1,
            grid=(n_tiles,),
            in_specs=in_specs,
            out_specs=out_spec,
        ),
        compiler_params=pltpu.CompilerParams(
            dimension_semantics=("parallel",),        # shards across TCs on v7x
            vmem_limit_bytes=32 * 1024 * 1024,        # explicit, v7x/v5e safe
        ),
        cost_estimate=cost,
    )(task_idx, *flat_inputs)

    if padded != batch:
        out = out[:batch]
    return out


# ----------------------------- model container ----------------------------- #

def _init_linear(key, in_features, out_features):
    """Deterministic init mimicking nn.Linear default (uniform +/- 1/sqrt(in)).

    Returns weight transposed to [in, out] (bf16) and bias as [1, out] (f32).
    """
    kw, kb = jax.random.split(key)
    bound = 1.0 / jnp.sqrt(jnp.float32(in_features))
    w = jax.random.uniform(kw, (out_features, in_features), jnp.float32,
                           minval=-bound, maxval=bound)
    b = jax.random.uniform(kb, (out_features,), jnp.float32,
                           minval=-bound, maxval=bound)
    return w.T.astype(jnp.bfloat16), b.reshape(1, out_features)


class BayesAdaptiveDecoderPallas:
    def __init__(self, args, exp_dict, key):
        self.input_feature_dim = args["input_feature_dim"]
        self.latent_feature_dim = args["latent_feature_dim"]
        self.max_width = args["max_width"]
        self.n_head_layers = args["n_head_layers"]
        self.n_shared_dec_layers = args["n_shared_dec_layers"]
        self.truncation_level = self.n_shared_dec_layers
        self.n_tasks = exp_dict["n_tasks"]

        keys = jax.random.split(key, 1 + self.n_tasks + self.n_shared_dec_layers)

        # Heads: latent -> max_width -> ... -> max_width (n_head_layers linears),
        # stacked across tasks so the kernel can select the task block via the
        # scalar-prefetched task_idx.
        model_size = ([self.latent_feature_dim]
                      + [self.max_width] * self.n_head_layers)
        per_task = []
        for t in range(self.n_tasks):
            hk = jax.random.split(keys[t], self.n_head_layers)
            per_task.append([
                _init_linear(hk[li], model_size[li], model_size[li + 1])
                for li in range(self.n_head_layers)])
        self.head_ws = tuple(
            jnp.stack([per_task[t][l][0] for t in range(self.n_tasks)])
            for l in range(self.n_head_layers))            # [n_tasks, din, dout]
        self.head_bs = tuple(
            jnp.stack([per_task[t][l][1] for t in range(self.n_tasks)])
            for l in range(self.n_head_layers))            # [n_tasks, 1, dout]

        # Shared decoder blocks (max_width -> max_width, residual), stacked.
        shared = [_init_linear(keys[self.n_tasks + l], self.max_width,
                               self.max_width)
                  for l in range(self.n_shared_dec_layers)]
        self.shared_w = jnp.stack([w for (w, _) in shared])   # [L, W, W] bf16
        self.shared_b = jnp.stack([b for (_, b) in shared])   # [L, 1, W] f32

        # Final layer: max_width -> input_feature_dim.
        self.final_w, self.final_b = _init_linear(
            keys[-1], self.max_width, self.input_feature_dim)

        # Deterministic stand-in for NetworkStructureSampler: all layers active.
        self.threshold = self.truncation_level

    def forward(self, z, task_idx):
        task = jnp.asarray([task_idx], dtype=jnp.int32)
        return _fused_forward(task, z, self.head_ws, self.head_bs,
                              self.shared_w, self.shared_b,
                              self.final_w, self.final_b)


# ------------------------- pure-JAX reference check ------------------------ #

def _reference_forward(model, z, task_idx):
    """Reference with identical dtype discipline (bf16 matmuls, f32 acc)."""
    x = z
    for hw, hb in zip(model.head_ws, model.head_bs):
        y = jnp.dot(x.astype(jnp.bfloat16), hw[task_idx],
                    preferred_element_type=jnp.float32) + hb[task_idx]
        x = jnp.maximum(y, 0.0)
    for l in range(model.shared_w.shape[0]):
        y = jnp.dot(x.astype(jnp.bfloat16), model.shared_w[l],
                    preferred_element_type=jnp.float32) + model.shared_b[l]
        x = jnp.maximum(y, 0.0) + x
    y = jnp.dot(x.astype(jnp.bfloat16), model.final_w,
                preferred_element_type=jnp.float32) + model.final_b
    return jax.nn.sigmoid(y)


# ---------------------------------- main ----------------------------------- #

if __name__ == "__main__":
    args = dict(
        input_feature_dim=256,
        latent_feature_dim=32,
        max_width=128,
        n_head_layers=2,
        n_shared_dec_layers=3,
    )
    exp_dict = dict(n_tasks=2)

    key = jax.random.PRNGKey(0)
    k_model, k_z = jax.random.split(key)

    model = BayesAdaptiveDecoderPallas(args, exp_dict, k_model)

    # batch=384 -> padded to 512 -> 2 grid steps of 256 rows each (exercises
    # tiling, padding, weight residency and the parallel batch axis).
    batch = 384
    z = jax.random.normal(k_z, (batch, args["latent_feature_dim"]), jnp.float32)

    out = model.forward(z, task_idx=1)
    out = jax.block_until_ready(out)

    assert out.shape == (batch, args["input_feature_dim"]), out.shape
    assert out.dtype == jnp.float32
    assert bool(jnp.all(jnp.isfinite(out)))
    assert bool(jnp.all(out >= 0.0)) and bool(jnp.all(out <= 1.0))  # sigmoid range

    ref = jax.block_until_ready(_reference_forward(model, z, 1))
    max_err = float(jnp.max(jnp.abs(out - ref)))
    assert max_err < 1e-2, f"max abs error vs reference: {max_err}"

    # Second task / second call reuses the same compiled kernel (task selected
    # in-kernel via the scalar-prefetched index).
    out0 = jax.block_until_ready(model.forward(z, task_idx=0))
    assert out0.shape == out.shape

    print("KERNEL_OK")
</pallas_src>

<mosaic_0001>
module attributes {stable_mosaic.version = 11 : i64} {
  func.func @kernel(%arg0: i32, %arg1: memref<1xi32, #tpu.memory_space<smem>>, %arg2: memref<256x32xf32, #tpu.memory_space<vmem>>, %arg3: memref<1x32x128xbf16, #tpu.memory_space<vmem>>, %arg4: memref<1x1x128xf32, #tpu.memory_space<vmem>>, %arg5: memref<1x128x128xbf16, #tpu.memory_space<vmem>>, %arg6: memref<1x1x128xf32, #tpu.memory_space<vmem>>, %arg7: memref<3x128x128xbf16, #tpu.memory_space<vmem>>, %arg8: memref<3x1x128xf32, #tpu.memory_space<vmem>>, %arg9: memref<128x256xbf16, #tpu.memory_space<vmem>>, %arg10: memref<1x256xf32, #tpu.memory_space<vmem>>, %arg11: memref<256x256xf32, #tpu.memory_space<vmem>>) attributes {dimension_semantics = [#tpu.dimension_semantics<parallel>], iteration_bounds = array<i64: 2>, scalar_prefetch = 1 : i64, scratch_operands = 0 : i64, tpu.core_type = #tpu.core_type<tc>, window_params = [{transform_indices = @transform_0, window_bounds = array<i64: 256, 32>}, {transform_indices = @transform_1, window_bounds = array<i64: 1, 32, 128>}, {transform_indices = @transform_2, window_bounds = array<i64: 1, 1, 128>}, {transform_indices = @transform_3, window_bounds = array<i64: 1, 128, 128>}, {transform_indices = @transform_4, window_bounds = array<i64: 1, 1, 128>}, {pipeline_mode = #tpu.pipeline_mode<synchronous>, transform_indices = @transform_5, window_bounds = array<i64: 3, 128, 128>}, {pipeline_mode = #tpu.pipeline_mode<synchronous>, transform_indices = @transform_6, window_bounds = array<i64: 3, 1, 128>}, {pipeline_mode = #tpu.pipeline_mode<synchronous>, transform_indices = @transform_7, window_bounds = array<i64: 128, 256>}, {pipeline_mode = #tpu.pipeline_mode<synchronous>, transform_indices = @transform_8, window_bounds = array<i64: 1, 256>}, {transform_indices = @transform_9, window_bounds = array<i64: 256, 256>}]} {
    %c0 = arith.constant 0 : index
    %c0_0 = arith.constant 0 : index
    %0 = vector.load %arg2[%c0, %c0_0] : memref<256x32xf32, #tpu.memory_space<vmem>>, vector<256x32xf32>
    %c0_1 = arith.constant 0 : index
    %c0_2 = arith.constant 0 : index
    %c0_3 = arith.constant 0 : index
    %1 = vector.load %arg3[%c0_1, %c0_2, %c0_3] : memref<1x32x128xbf16, #tpu.memory_space<vmem>>, vector<1x32x128xbf16>
    %2 = vector.shape_cast %1 : vector<1x32x128xbf16> to vector<32x128xbf16>
    %c0_4 = arith.constant 0 : index
    %c0_5 = arith.constant 0 : index
    %c0_6 = arith.constant 0 : index
    %3 = vector.load %arg4[%c0_4, %c0_5, %c0_6] : memref<1x1x128xf32, #tpu.memory_space<vmem>>, vector<1x1x128xf32>
    %4 = vector.shape_cast %3 : vector<1x1x128xf32> to vector<1x128xf32>
    %5 = arith.truncf %0 : vector<256x32xf32> to vector<256x32xbf16>
    %cst = arith.constant dense<0.000000e+00> : vector<256x128xf32>
    %6 = tpu.matmul %5, %2, %cst {dimension_numbers = #tpu.dot_dimension_numbers<[1], [0], [0], [1], [0, 0, 1, 1], [], []>} : vector<256x32xbf16>, vector<32x128xbf16>, vector<256x128xf32> -> vector<256x128xf32>
    %7 = vector.broadcast %4 : vector<1x128xf32> to vector<256x128xf32>
    %8 = arith.addf %6, %7 : vector<256x128xf32>
    %cst_7 = arith.constant 0.000000e+00 : f32
    %9 = vector.broadcast %cst_7 : f32 to vector<256x128xf32>
    %10 = arith.maximumf %8, %9 : vector<256x128xf32>
    %c0_8 = arith.constant 0 : index
    %c0_9 = arith.constant 0 : index
    %c0_10 = arith.constant 0 : index
    %11 = vector.load %arg5[%c0_8, %c0_9, %c0_10] : memref<1x128x128xbf16, #tpu.memory_space<vmem>>, vector<1x128x128xbf16>
    %12 = vector.shape_cast %11 : vector<1x128x128xbf16> to vector<128x128xbf16>
    %c0_11 = arith.constant 0 : index
    %c0_12 = arith.constant 0 : index
    %c0_13 = arith.constant 0 : index
    %13 = vector.load %arg6[%c0_11, %c0_12, %c0_13] : memref<1x1x128xf32, #tpu.memory_space<vmem>>, vector<1x1x128xf32>
    %14 = vector.shape_cast %13 : vector<1x1x128xf32> to vector<1x128xf32>
    %15 = arith.truncf %10 : vector<256x128xf32> to vector<256x128xbf16>
    %cst_14 = arith.constant dense<0.000000e+00> : vector<256x128xf32>
    %16 = tpu.matmul %15, %12, %cst_14 {dimension_numbers = #tpu.dot_dimension_numbers<[1], [0], [0], [1], [0, 0, 1, 1], [], []>} : vector<256x128xbf16>, vector<128x128xbf16>, vector<256x128xf32> -> vector<256x128xf32>
    %17 = vector.broadcast %14 : vector<1x128xf32> to vector<256x128xf32>
    %18 = arith.addf %16, %17 : vector<256x128xf32>
    %cst_15 = arith.constant 0.000000e+00 : f32
    %19 = vector.broadcast %cst_15 : f32 to vector<256x128xf32>
    %20 = arith.maximumf %18, %19 : vector<256x128xf32>
    %c0_16 = arith.constant 0 : index
    %c0_17 = arith.constant 0 : index
    %c0_18 = arith.constant 0 : index
    %21 = vector.load %arg7[%c0_16, %c0_17, %c0_18] : memref<3x128x128xbf16, #tpu.memory_space<vmem>>, vector<1x128x128xbf16>
    %22 = vector.shape_cast %21 : vector<1x128x128xbf16> to vector<128x128xbf16>
    %c0_19 = arith.constant 0 : index
    %c0_20 = arith.constant 0 : index
    %c0_21 = arith.constant 0 : index
    %23 = vector.load %arg8[%c0_19, %c0_20, %c0_21] : memref<3x1x128xf32, #tpu.memory_space<vmem>>, vector<1x1x128xf32>
    %24 = vector.shape_cast %23 : vector<1x1x128xf32> to vector<1x128xf32>
    %25 = arith.truncf %20 : vector<256x128xf32> to vector<256x128xbf16>
    %cst_22 = arith.constant dense<0.000000e+00> : vector<256x128xf32>
    %26 = tpu.matmul %25, %22, %cst_22 {dimension_numbers = #tpu.dot_dimension_numbers<[1], [0], [0], [1], [0, 0, 1, 1], [], []>} : vector<256x128xbf16>, vector<128x128xbf16>, vector<256x128xf32> -> vector<256x128xf32>
    %27 = vector.broadcast %24 : vector<1x128xf32> to vector<256x128xf32>
    %28 = arith.addf %26, %27 : vector<256x128xf32>
    %cst_23 = arith.constant 0.000000e+00 : f32
    %29 = vector.broadcast %cst_23 : f32 to vector<256x128xf32>
    %30 = arith.maximumf %28, %29 : vector<256x128xf32>
    %31 = arith.addf %30, %20 : vector<256x128xf32>
    %c1 = arith.constant 1 : index
    %c0_24 = arith.constant 0 : index
    %c0_25 = arith.constant 0 : index
    %32 = vector.load %arg7[%c1, %c0_24, %c0_25] : memref<3x128x128xbf16, #tpu.memory_space<vmem>>, vector<1x128x128xbf16>
    %33 = vector.shape_cast %32 : vector<1x128x128xbf16> to vector<128x128xbf16>
    %c1_26 = arith.constant 1 : index
    %c0_27 = arith.constant 0 : index
    %c0_28 = arith.constant 0 : index
    %34 = vector.load %arg8[%c1_26, %c0_27, %c0_28] : memref<3x1x128xf32, #tpu.memory_space<vmem>>, vector<1x1x128xf32>
    %35 = vector.shape_cast %34 : vector<1x1x128xf32> to vector<1x128xf32>
    %36 = arith.truncf %31 : vector<256x128xf32> to vector<256x128xbf16>
    %cst_29 = arith.constant dense<0.000000e+00> : vector<256x128xf32>
    %37 = tpu.matmul %36, %33, %cst_29 {dimension_numbers = #tpu.dot_dimension_numbers<[1], [0], [0], [1], [0, 0, 1, 1], [], []>} : vector<256x128xbf16>, vector<128x128xbf16>, vector<256x128xf32> -> vector<256x128xf32>
    %38 = vector.broadcast %35 : vector<1x128xf32> to vector<256x128xf32>
    %39 = arith.addf %37, %38 : vector<256x128xf32>
    %cst_30 = arith.constant 0.000000e+00 : f32
    %40 = vector.broadcast %cst_30 : f32 to vector<256x128xf32>
    %41 = arith.maximumf %39, %40 : vector<256x128xf32>
    %42 = arith.addf %41, %31 : vector<256x128xf32>
    %c2 = arith.constant 2 : index
    %c0_31 = arith.constant 0 : index
    %c0_32 = arith.constant 0 : index
    %43 = vector.load %arg7[%c2, %c0_31, %c0_32] : memref<3x128x128xbf16, #tpu.memory_space<vmem>>, vector<1x128x128xbf16>
    %44 = vector.shape_cast %43 : vector<1x128x128xbf16> to vector<128x128xbf16>
    %c2_33 = arith.constant 2 : index
    %c0_34 = arith.constant 0 : index
    %c0_35 = arith.constant 0 : index
    %45 = vector.load %arg8[%c2_33, %c0_34, %c0_35] : memref<3x1x128xf32, #tpu.memory_space<vmem>>, vector<1x1x128xf32>
    %46 = vector.shape_cast %45 : vector<1x1x128xf32> to vector<1x128xf32>
    %47 = arith.truncf %42 : vector<256x128xf32> to vector<256x128xbf16>
    %cst_36 = arith.constant dense<0.000000e+00> : vector<256x128xf32>
    %48 = tpu.matmul %47, %44, %cst_36 {dimension_numbers = #tpu.dot_dimension_numbers<[1], [0], [0], [1], [0, 0, 1, 1], [], []>} : vector<256x128xbf16>, vector<128x128xbf16>, vector<256x128xf32> -> vector<256x128xf32>
    %49 = vector.broadcast %46 : vector<1x128xf32> to vector<256x128xf32>
    %50 = arith.addf %48, %49 : vector<256x128xf32>
    %cst_37 = arith.constant 0.000000e+00 : f32
    %51 = vector.broadcast %cst_37 : f32 to vector<256x128xf32>
    %52 = arith.maximumf %50, %51 : vector<256x128xf32>
    %53 = arith.addf %52, %42 : vector<256x128xf32>
    %54 = arith.truncf %53 : vector<256x128xf32> to vector<256x128xbf16>
    %c0_38 = arith.constant 0 : index
    %c0_39 = arith.constant 0 : index
    %55 = vector.load %arg9[%c0_38, %c0_39] : memref<128x256xbf16, #tpu.memory_space<vmem>>, vector<128x256xbf16>
    %cst_40 = arith.constant dense<0.000000e+00> : vector<256x256xf32>
    %56 = tpu.matmul %54, %55, %cst_40 {dimension_numbers = #tpu.dot_dimension_numbers<[1], [0], [0], [1], [0, 0, 1, 1], [], []>} : vector<256x128xbf16>, vector<128x256xbf16>, vector<256x256xf32> -> vector<256x256xf32>
    %c0_41 = arith.constant 0 : index
    %c0_42 = arith.constant 0 : index
    %57 = vector.load %arg10[%c0_41, %c0_42] : memref<1x256xf32, #tpu.memory_space<vmem>>, vector<1x256xf32>
    %58 = vector.broadcast %57 : vector<1x256xf32> to vector<256x256xf32>
    %59 = arith.addf %56, %58 : vector<256x256xf32>
    %60 = arith.negf %59 : vector<256x256xf32>
    %61 = math.exp %60 : vector<256x256xf32>
    %cst_43 = arith.constant 1.000000e+00 : f32
    %62 = vector.broadcast %cst_43 : f32 to vector<256x256xf32>
    %63 = arith.addf %62, %61 : vector<256x256xf32>
    %64 = arith.divf %62, %63 : vector<256x256xf32>
    %c0_44 = arith.constant 0 : index
    %c0_45 = arith.constant 0 : index
    %65 = vector.load %arg11[%c0_44, %c0_45] : memref<256x256xf32, #tpu.memory_space<vmem>>, vector<256x256xf32>
    tpu.vector_store %arg11[%c0_44, %c0_45], %64 {strides = array<i32>} : memref<256x256xf32, #tpu.memory_space<vmem>>, vector<256x256xf32>,
    return
  }
  func.func @transform_0(%arg0: i32, %arg1: memref<1xi32, #tpu.memory_space<smem>>) -> (i32, i32) {
    %c0_i32 = arith.constant 0 : i32
    %c0_i32_0 = arith.constant 0 : i32
    return %arg0, %c0_i32 : i32, i32
  }
  func.func @transform_1(%arg0: i32, %arg1: memref<1xi32, #tpu.memory_space<smem>>) -> (i32, i32, i32) {
    %c0 = arith.constant 0 : index
    %0 = memref.load %arg1[%c0] : memref<1xi32, #tpu.memory_space<smem>>
    %c0_i32 = arith.constant 0 : i32
    %c0_i32_0 = arith.constant 0 : i32
    %c0_i32_1 = arith.constant 0 : i32
    return %0, %c0_i32, %c0_i32_0 : i32, i32, i32
  }
  func.func @transform_2(%arg0: i32, %arg1: memref<1xi32, #tpu.memory_space<smem>>) -> (i32, i32, i32) {
    %c0 = arith.constant 0 : index
    %0 = memref.load %arg1[%c0] : memref<1xi32, #tpu.memory_space<smem>>
    %c0_i32 = arith.constant 0 : i32
    %c0_i32_0 = arith.constant 0 : i32
    %c0_i32_1 = arith.constant 0 : i32
    return %0, %c0_i32, %c0_i32_0 : i32, i32, i32
  }
  func.func @transform_3(%arg0: i32, %arg1: memref<1xi32, #tpu.memory_space<smem>>) -> (i32, i32, i32) {
    %c0 = arith.constant 0 : index
    %0 = memref.load %arg1[%c0] : memref<1xi32, #tpu.memory_space<smem>>
    %c0_i32 = arith.constant 0 : i32
    %c0_i32_0 = arith.constant 0 : i32
    %c0_i32_1 = arith.constant 0 : i32
    return %0, %c0_i32, %c0_i32_0 : i32, i32, i32
  }
  func.func @transform_4(%arg0: i32, %arg1: memref<1xi32, #tpu.memory_space<smem>>) -> (i32, i32, i32) {
    %c0 = arith.constant 0 : index
    %0 = memref.load %arg1[%c0] : memref<1xi32, #tpu.memory_space<smem>>
    %c0_i32 = arith.constant 0 : i32
    %c0_i32_0 = arith.constant 0 : i32
    %c0_i32_1 = arith.constant 0 : i32
    return %0, %c0_i32, %c0_i32_0 : i32, i32, i32
  }
  func.func @transform_5(%arg0: i32, %arg1: memref<1xi32, #tpu.memory_space<smem>>) -> (i32, i32, i32) {
    %c0_i32 = arith.constant 0 : i32
    %c0_i32_0 = arith.constant 0 : i32
    %c0_i32_1 = arith.constant 0 : i32
    %c0_i32_2 = arith.constant 0 : i32
    return %c0_i32, %c0_i32_0, %c0_i32_1 : i32, i32, i32
  }
  func.func @transform_6(%arg0: i32, %arg1: memref<1xi32, #tpu.memory_space<smem>>) -> (i32, i32, i32) {
    %c0_i32 = arith.constant 0 : i32
    %c0_i32_0 = arith.constant 0 : i32
    %c0_i32_1 = arith.constant 0 : i32
    %c0_i32_2 = arith.constant 0 : i32
    return %c0_i32, %c0_i32_0, %c0_i32_1 : i32, i32, i32
  }
  func.func @transform_7(%arg0: i32, %arg1: memref<1xi32, #tpu.memory_space<smem>>) -> (i32, i32) {
    %c0_i32 = arith.constant 0 : i32
    %c0_i32_0 = arith.constant 0 : i32
    %c0_i32_1 = arith.constant 0 : i32
    return %c0_i32, %c0_i32_0 : i32, i32
  }
  func.func @transform_8(%arg0: i32, %arg1: memref<1xi32, #tpu.memory_space<smem>>) -> (i32, i32) {
    %c0_i32 = arith.constant 0 : i32
    %c0_i32_0 = arith.constant 0 : i32
    %c0_i32_1 = arith.constant 0 : i32
    return %c0_i32, %c0_i32_0 : i32, i32
  }
  func.func @transform_9(%arg0: i32, %arg1: memref<1xi32, #tpu.memory_space<smem>>) -> (i32, i32) {
    %c0_i32 = arith.constant 0 : i32
    %c0_i32_0 = arith.constant 0 : i32
    return %arg0, %c0_i32 : i32, i32
  }
}

</mosaic_0001>

<llo_original>
// kernel: _fused_forward.1
$region0: #{_fused_forward.1}
  #allocation0 [shape = 'u32[]', space=smem, size = 0x4, offset = 0x4, fixed_abs, tag = 'smem constant byte address 0x4 - core index']
  #allocation1 [shape = 'u32[144,128]{1,0:T(1,128)}', space=vmem, size = 0x12000, scoped, tag = 'internal scratch']
  #allocation2 [shape = 's32[1]{0}', space=sflag, size = 0x4, scoped, tag = 'scoped memory for _fused_forward.1']
  #allocation3 [shape = 's32[1]{0:T(128)S(6)}', space=smem, size = 0x200, scoped, tag = 'prefetched SMEM operand 0']
  %s0 = inlined_call_operand.<no memory space> [shape: s32[1], index: 0, kind: input, shape index: {}]
  %s1 = inlined_call_operand.vmem [shape: f32[512,32], index: 1, kind: input, shape index: {}]
  %s2 = inlined_call_operand.vmem [shape: bf16[2,32,128], index: 2, kind: input, shape index: {}]
  %s3 = inlined_call_operand.vmem [shape: f32[2,1,128], index: 3, kind: input, shape index: {}]
  %s4 = inlined_call_operand.vmem [shape: bf16[2,128,128], index: 4, kind: input, shape index: {}]
  %s5 = inlined_call_operand.vmem [shape: f32[2,1,128], index: 5, kind: input, shape index: {}]
  %s6 = inlined_call_operand.vmem [shape: bf16[3,128,128], index: 6, kind: input, shape index: {}]
  %s7 = inlined_call_operand.vmem [shape: f32[3,1,128], index: 7, kind: input, shape index: {}]
  %s8 = inlined_call_operand.vmem [shape: bf16[128,256], index: 8, kind: input, shape index: {}]
  %s9 = inlined_call_operand.vmem [shape: f32[1,256], index: 9, kind: input, shape index: {}]
  %s10 = inlined_call_operand.vmem [shape: f32[512,256], index: 10, kind: output, shape index: {}]
  %s11 = sld [smem:[#allocation0]]
  $region69: #{_fused_forward.1} parent=0
    _
  %s13 = ssub.s32 1, %s11
  %s14 = scalar_select 0, %s13, %s11
  %15 = sst [smem:[#allocation3]] %s0
  loop: start=0, step=1, limit=4
  $region2: #{_fused_forward.1} parent=0 // loop_pre_header
    _
  $region3: #{_fused_forward.1} parent=0 // loop_header
    %s17 = sphi 0, %s21
    %p18 = scmp.ge.s32.totalorder %s17, 4
    %s27 = sphi 0, %s29
    %s30 = sphi 0, %s27
    %s31 = sphi 0, %s30
    %s47 = sphi 0, %s31
    %s55 = sphi 0, %s57
    %s58 = sphi 0, %s55
    %s59 = sphi 0, %s58
    %s75 = sphi 0, %s59
    %s83 = sphi 0, %s85
    %s86 = sphi 0, %s83
    %s87 = sphi 0, %s86
    %s103 = sphi 0, %s87
    %s111 = sphi 0, %s113
    %s114 = sphi 0, %s111
    %s115 = sphi 0, %s114
    %s131 = sphi 0, %s115
    %s139 = sphi 0, %s141
    %s142 = sphi 0, %s139
    %s143 = sphi 0, %s142
    %s159 = sphi 0, %s143
    %s163 = sphi 0, %s163
    %s165 = sphi 0, %s163
    %s166 = sphi 0, %s165
    %s180 = sphi 0, %s166
    %s184 = sphi 0, %s184
    %s186 = sphi 0, %s184
    %s187 = sphi 0, %s186
    %s201 = sphi 0, %s187
    %s205 = sphi 0, %s205
    %s207 = sphi 0, %s205
    %s208 = sphi 0, %s207
    %s222 = sphi 0, %s208
    %s226 = sphi 0, %s226
    %s228 = sphi 0, %s226
    %s229 = sphi 0, %s228
    %s243 = sphi 0, %s229
    %s249 = sphi 0, %s251
    %s252 = sphi 0, %s249
    %s253 = sphi 0, %s252
    %s269 = sphi 0, %s253
  $region4: #{_fused_forward.1} parent=0 // loop_header_branch
    %20 = sbr.rel (%p18) target = $region8
  $region5: #{_fused_forward.1} parent=0 // loop_body
    %s22 = ssub.s32 %s17, 1
    %s23 = ssub.s32 %s17, 2
    %s24 = sadd.s32 %s17, 1
    %s25 = ssub.s32 %s17, %s24
    %p26 = scmp.eq.s32.totalorder %s25, 0
    %s28 = sadd.s32 %s27, 1
    %s29 = scalar_select %p26, %s27, %s28
    %p32 = pneg %p26
    %p33 = scmp.eq.s32.totalorder %s17, 1
    %p34 = por %p32, %p33
    %p35 = scmp.ne.s32.totalorder %s27, %s30
    %p36 = scmp.eq.s32.totalorder %s17, 0
    %p37 = por %p35, %p36
    %p38 = scmp.ne.s32.totalorder %s27, %s30
    %p39 = scmp.eq.s32.totalorder %s22, 1
    %p40 = por %p38, %p39
    %p41 = scmp.ne.s32.totalorder %s30, %s31
    %p42 = scmp.eq.s32.totalorder %s22, 0
    %p43 = por %p41, %p42
    %p44 = scmp.ne.s32.totalorder %s30, %s31
    %p45 = scmp.eq.s32.totalorder %s23, 1
    %p46 = por %p44, %p45
    %p48 = scmp.ne.s32.totalorder %s31, %s47
    %p49 = scmp.eq.s32.totalorder %s23, 0
    %p50 = por %p48, %p49
    %s51 = sld [smem:[#allocation3]]
    %s52 = sld [smem:[#allocation3]]
    %s53 = ssub.s32 %s51, %s52
    %p54 = scmp.eq.s32.totalorder %s53, 0
    %s56 = sadd.s32 %s55, 1
    %s57 = scalar_select %p54, %s55, %s56
    %p60 = pneg %p54
    %p61 = scmp.eq.s32.totalorder %s17, 1
    %p62 = por %p60, %p61
    %p63 = scmp.ne.s32.totalorder %s55, %s58
    %p64 = scmp.eq.s32.totalorder %s17, 0
    %p65 = por %p63, %p64
    %p66 = scmp.ne.s32.totalorder %s55, %s58
    %p67 = scmp.eq.s32.totalorder %s22, 1
    %p68 = por %p66, %p67
    %p69 = scmp.ne.s32.totalorder %s58, %s59
    %p70 = scmp.eq.s32.totalorder %s22, 0
    %p71 = por %p69, %p70
    %p72 = scmp.ne.s32.totalorder %s58, %s59
    %p73 = scmp.eq.s32.totalorder %s23, 1
    %p74 = por %p72, %p73
    %p76 = scmp.ne.s32.totalorder %s59, %s75
    %p77 = scmp.eq.s32.totalorder %s23, 0
    %p78 = por %p76, %p77
    %s79 = sld [smem:[#allocation3]]
    %s80 = sld [smem:[#allocation3]]
    %s81 = ssub.s32 %s79, %s80
    %p82 = scmp.eq.s32.totalorder %s81, 0
    %s84 = sadd.s32 %s83, 1
    %s85 = scalar_select %p82, %s83, %s84
    %p88 = pneg %p82
    %p89 = scmp.eq.s32.totalorder %s17, 1
    %p90 = por %p88, %p89
    %p91 = scmp.ne.s32.totalorder %s83, %s86
    %p92 = scmp.eq.s32.totalorder %s17, 0
    %p93 = por %p91, %p92
    %p94 = scmp.ne.s32.totalorder %s83, %s86
    %p95 = scmp.eq.s32.totalorder %s22, 1
    %p96 = por %p94, %p95
    %p97 = scmp.ne.s32.totalorder %s86, %s87
    %p98 = scmp.eq.s32.totalorder %s22, 0
    %p99 = por %p97, %p98
    %p100 = scmp.ne.s32.totalorder %s86, %s87
    %p101 = scmp.eq.s32.totalorder %s23, 1
    %p102 = por %p100, %p101
    %p104 = scmp.ne.s32.totalorder %s87, %s103
    %p105 = scmp.eq.s32.totalorder %s23, 0
    %p106 = por %p104, %p105
    %s107 = sld [smem:[#allocation3]]
    %s108 = sld [smem:[#allocation3]]
    %s109 = ssub.s32 %s107, %s108
    %p110 = scmp.eq.s32.totalorder %s109, 0
    %s112 = sadd.s32 %s111, 1
    %s113 = scalar_select %p110, %s111, %s112
    %p116 = pneg %p110
    %p117 = scmp.eq.s32.totalorder %s17, 1
    %p118 = por %p116, %p117
    %p119 = scmp.ne.s32.totalorder %s111, %s114
    %p120 = scmp.eq.s32.totalorder %s17, 0
    %p121 = por %p119, %p120
    %p122 = scmp.ne.s32.totalorder %s111, %s114
    %p123 = scmp.eq.s32.totalorder %s22, 1
    %p124 = por %p122, %p123
    %p125 = scmp.ne.s32.totalorder %s114, %s115
    %p126 = scmp.eq.s32.totalorder %s22, 0
    %p127 = por %p125, %p126
    %p128 = scmp.ne.s32.totalorder %s114, %s115
    %p129 = scmp.eq.s32.totalorder %s23, 1
    %p130 = por %p128, %p129
    %p132 = scmp.ne.s32.totalorder %s115, %s131
    %p133 = scmp.eq.s32.totalorder %s23, 0
    %p134 = por %p132, %p133
    %s135 = sld [smem:[#allocation3]]
    %s136 = sld [smem:[#allocation3]]
    %s137 = ssub.s32 %s135, %s136
    %p138 = scmp.eq.s32.totalorder %s137, 0
    %s140 = sadd.s32 %s139, 1
    %s141 = scalar_select %p138, %s139, %s140
    %p144 = pneg %p138
    %p145 = scmp.eq.s32.totalorder %s17, 1
    %p146 = por %p144, %p145
    %p147 = scmp.ne.s32.totalorder %s139, %s142
    %p148 = scmp.eq.s32.totalorder %s17, 0
    %p149 = por %p147, %p148
    %p150 = scmp.ne.s32.totalorder %s139, %s142
    %p151 = scmp.eq.s32.totalorder %s22, 1
    %p152 = por %p150, %p151
    %p153 = scmp.ne.s32.totalorder %s142, %s143
    %p154 = scmp.eq.s32.totalorder %s22, 0
    %p155 = por %p153, %p154
    %p156 = scmp.ne.s32.totalorder %s142, %s143
    %p157 = scmp.eq.s32.totalorder %s23, 1
    %p158 = por %p156, %p157
    %p160 = scmp.ne.s32.totalorder %s143, %s159
    %p161 = scmp.eq.s32.totalorder %s23, 0
    %p162 = por %p160, %p161
    %s164 = sadd.s32 %s163, 1
    %p167 = scmp.eq.s32.totalorder %s17, 1
    %p168 = scmp.ne.s32.totalorder %s163, %s165
    %p169 = scmp.eq.s32.totalorder %s17, 0
    %p170 = por %p168, %p169
    %p171 = scmp.ne.s32.totalorder %s163, %s165
    %p172 = scmp.eq.s32.totalorder %s22, 1
    %p173 = por %p171, %p172
    %p174 = scmp.ne.s32.totalorder %s165, %s166
    %p175 = scmp.eq.s32.totalorder %s22, 0
    %p176 = por %p174, %p175
    %p177 = scmp.ne.s32.totalorder %s165, %s166
    %p178 = scmp.eq.s32.totalorder %s23, 1
    %p179 = por %p177, %p178
    %p181 = scmp.ne.s32.totalorder %s166, %s180
    %p182 = scmp.eq.s32.totalorder %s23, 0
    %p183 = por %p181, %p182
    %s185 = sadd.s32 %s184, 1
    %p188 = scmp.eq.s32.totalorder %s17, 1
    %p189 = scmp.ne.s32.totalorder %s184, %s186
    %p190 = scmp.eq.s32.totalorder %s17, 0
    %p191 = por %p189, %p190
    %p192 = scmp.ne.s32.totalorder %s184, %s186
    %p193 = scmp.eq.s32.totalorder %s22, 1
    %p194 = por %p192, %p193
    %p195 = scmp.ne.s32.totalorder %s186, %s187
    %p196 = scmp.eq.s32.totalorder %s22, 0
    %p197 = por %p195, %p196
    %p198 = scmp.ne.s32.totalorder %s186, %s187
    %p199 = scmp.eq.s32.totalorder %s23, 1
    %p200 = por %p198, %p199
    %p202 = scmp.ne.s32.totalorder %s187, %s201
    %p203 = scmp.eq.s32.totalorder %s23, 0
    %p204 = por %p202, %p203
    %s206 = sadd.s32 %s205, 1
    %p209 = scmp.eq.s32.totalorder %s17, 1
    %p210 = scmp.ne.s32.totalorder %s205, %s207
    %p211 = scmp.eq.s32.totalorder %s17, 0
    %p212 = por %p210, %p211
    %p213 = scmp.ne.s32.totalorder %s205, %s207
    %p214 = scmp.eq.s32.totalorder %s22, 1
    %p215 = por %p213, %p214
    %p216 = scmp.ne.s32.totalorder %s207, %s208
    %p217 = scmp.eq.s32.totalorder %s22, 0
    %p218 = por %p216, %p217
    %p219 = scmp.ne.s32.totalorder %s207, %s208
    %p220 = scmp.eq.s32.totalorder %s23, 1
    %p221 = por %p219, %p220
    %p223 = scmp.ne.s32.totalorder %s208, %s222
    %p224 = scmp.eq.s32.totalorder %s23, 0
    %p225 = por %p223, %p224
    %s227 = sadd.s32 %s226, 1
    %p230 = scmp.eq.s32.totalorder %s17, 1
    %p231 = scmp.ne.s32.totalorder %s226, %s228
    %p232 = scmp.eq.s32.totalorder %s17, 0
    %p233 = por %p231, %p232
    %p234 = scmp.ne.s32.totalorder %s226, %s228
    %p235 = scmp.eq.s32.totalorder %s22, 1
    %p236 = por %p234, %p235
    %p237 = scmp.ne.s32.totalorder %s228, %s229
    %p238 = scmp.eq.s32.totalorder %s22, 0
    %p239 = por %p237, %p238
    %p240 = scmp.ne.s32.totalorder %s228, %s229
    %p241 = scmp.eq.s32.totalorder %s23, 1
    %p242 = por %p240, %p241
    %p244 = scmp.ne.s32.totalorder %s229, %s243
    %p245 = scmp.eq.s32.totalorder %s23, 0
    %p246 = por %p244, %p245
    %s247 = ssub.s32 %s17, %s24
    %p248 = scmp.eq.s32.totalorder %s247, 0
    %s250 = sadd.s32 %s249, 1
    %s251 = scalar_select %p248, %s249, %s250
    %p254 = pneg %p248
    %p255 = scmp.eq.s32.totalorder %s17, 1
    %p256 = por %p254, %p255
    %p257 = scmp.ne.s32.totalorder %s249, %s252
    %p258 = scmp.eq.s32.totalorder %s17, 0
    %p259 = por %p257, %p258
    %p260 = scmp.ne.s32.totalorder %s249, %s252
    %p261 = scmp.eq.s32.totalorder %s22, 1
    %p262 = por %p260, %p261
    %p263 = scmp.ne.s32.totalorder %s252, %s253
    %p264 = scmp.eq.s32.totalorder %s22, 0
    %p265 = por %p263, %p264
    %p266 = scmp.ne.s32.totalorder %s252, %s253
    %p267 = scmp.eq.s32.totalorder %s23, 1
    %p268 = por %p266, %p267
    %p270 = scmp.ne.s32.totalorder %s253, %s269
    %p271 = scmp.eq.s32.totalorder %s23, 0
    %p272 = por %p270, %p271
    %p273 = scmp.le.s32.totalorder 1, %s17
    %p274 = scmp.lt.s32.totalorder %s17, 3
    %p275 = pnand %p273, %p274
    %p276 = pneg %p275
    // Predicated region
    $region9: #{_fused_forward.1} parent=5 // pred_check
      _
    $region10: #{_fused_forward.1} parent=5 // pred_check_branch
      %278 = sbr.rel (%p275) target = $region12
    $region11: #{_fused_forward.1} parent=5 // pred_region
      %s279 = ssub.s32 %s17, 1
      // Predicated region
      $region13: #{_fused_forward.1} parent=11 // pred_check
        %p280 = pneg %p71
      $region14: #{_fused_forward.1} parent=11 // pred_check_branch
        %282 = sbr.rel (%p280) target = $region16
      $region15: #{_fused_forward.1} parent=11 // pred_region
        %s283 = sld [smem:[#allocation3]]
        %p284 = scmp.lt.s32.totalorder %s283, 1
        %s285 = scalar_select %p284, %s283, 1
        %s286 = smul.addr %s285, 4
        %s287 = smul.addr %s286, 4
        %s288 = scalar_lea.vmem %s2, %s287
        %s289 = sld [smem:[#allocation3]]
      $region16: #{_fused_forward.1} parent=11 // pred_fallthru
        _
      // Predicated region
      $region17: #{_fused_forward.1} parent=11 // pred_check
        %p290 = pneg %p99
      $region18: #{_fused_forward.1} parent=11 // pred_check_branch
        %292 = sbr.rel (%p290) target = $region20
      $region19: #{_fused_forward.1} parent=11 // pred_region
        %s293 = sld [smem:[#allocation3]]
        %p294 = scmp.lt.s32.totalorder %s293, 1
        %s295 = scalar_select %p294, %s293, 1
        %s296 = scalar_lea.vmem %s3, %s295
        %s297 = sld [smem:[#allocation3]]
      $region20: #{_fused_forward.1} parent=11 // pred_fallthru
        _
      // Predicated region
      $region21: #{_fused_forward.1} parent=11 // pred_check
        %p298 = pneg %p127
      $region22: #{_fused_forward.1} parent=11 // pred_check_branch
        %300 = sbr.rel (%p298) target = $region24
      $region23: #{_fused_forward.1} parent=11 // pred_region
        %s301 = sld [smem:[#allocation3]]
        %p302 = scmp.lt.s32.totalorder %s301, 1
        %s303 = scalar_select %p302, %s301, 1
        %s304 = smul.addr %s303, 16
        %s305 = smul.addr %s304, 4
        %s306 = scalar_lea.vmem %s4, %s305
        %s307 = sld [smem:[#allocation3]]
      $region24: #{_fused_forward.1} parent=11 // pred_fallthru
        _
      // Predicated region
      $region25: #{_fused_forward.1} parent=11 // pred_check
        %p308 = pneg %p155
      $region26: #{_fused_forward.1} parent=11 // pred_check_branch
        %310 = sbr.rel (%p308) target = $region28
      $region27: #{_fused_forward.1} parent=11 // pred_region
        %s311 = sld [smem:[#allocation3]]
        %p312 = scmp.lt.s32.totalorder %s311, 1
        %s313 = scalar_select %p312, %s311, 1
        %s314 = scalar_lea.vmem %s5, %s313
        %s315 = sld [smem:[#allocation3]]
      $region28: #{_fused_forward.1} parent=11 // pred_fallthru
        _
      // Predicated region
      $region29: #{_fused_forward.1} parent=11 // pred_check
        %p316 = pneg %p176
      $region30: #{_fused_forward.1} parent=11 // pred_check_branch
        %318 = sbr.rel (%p316) target = $region32
      $region31: #{_fused_forward.1} parent=11 // pred_region
        _
      $region32: #{_fused_forward.1} parent=11 // pred_fallthru
        _
      // Predicated region
      $region33: #{_fused_forward.1} parent=11 // pred_check
        %p319 = pneg %p197
      $region34: #{_fused_forward.1} parent=11 // pred_check_branch
        %321 = sbr.rel (%p319) target = $region36
      $region35: #{_fused_forward.1} parent=11 // pred_region
        _
      $region36: #{_fused_forward.1} parent=11 // pred_fallthru
        _
      // Predicated region
      $region37: #{_fused_forward.1} parent=11 // pred_check
        %p322 = pneg %p218
      $region38: #{_fused_forward.1} parent=11 // pred_check_branch
        %324 = sbr.rel (%p322) target = $region40
      $region39: #{_fused_forward.1} parent=11 // pred_region
        _
      $region40: #{_fused_forward.1} parent=11 // pred_fallthru
        _
      // Predicated region
      $region41: #{_fused_forward.1} parent=11 // pred_check
        %p325 = pneg %p239
      $region42: #{_fused_forward.1} parent=11 // pred_check_branch
        %327 = sbr.rel (%p325) target = $region44
      $region43: #{_fused_forward.1} parent=11 // pred_region
        _
      $region44: #{_fused_forward.1} parent=11 // pred_fallthru
        _
    $region12: #{_fused_forward.1} parent=5 // pred_fallthru
      _
    %p328 = scmp.lt.s32.totalorder %s17, 2
    // Predicated region
    $region45: #{_fused_forward.1} parent=5 // pred_check
      %p329 = pneg %p328
    $region46: #{_fused_forward.1} parent=5 // pred_check_branch
      %331 = sbr.rel (%p329) target = $region48
    $region47: #{_fused_forward.1} parent=5 // pred_region
      // Predicated region
      $region49: #{_fused_forward.1} parent=47 // pred_check
        %p332 = pneg %p37
      $region50: #{_fused_forward.1} parent=47 // pred_check_branch
        %334 = sbr.rel (%p332) target = $region52
      $region51: #{_fused_forward.1} parent=47 // pred_region
        %s335 = smul.u32 32, %s17
        %p336 = scmp.lt.s32.totalorder %s335, 63
        %s337 = scalar_select %p336, %s335, 63
        %s338 = smul.addr %s337, 8
        %s339 = scalar_lea.vmem %s1, %s338
        %s340 = smul.u32 32, %s17
      $region52: #{_fused_forward.1} parent=47 // pred_fallthru
        _
    $region48: #{_fused_forward.1} parent=5 // pred_fallthru
      _
    %p341 = scmp.le.s32.totalorder 1, %s17
    %p342 = scmp.lt.s32.totalorder %s17, 3
    %p343 = pnand %p341, %p342
    %p344 = pneg %p343
    // Predicated region
    $region53: #{_fused_forward.1} parent=5 // pred_check
      _
    $region54: #{_fused_forward.1} parent=5 // pred_check_branch
      %346 = sbr.rel (%p343) target = $region56
    $region55: #{_fused_forward.1} parent=5 // pred_region
      %s347 = ssub.s32 %s17, 1
      %s348 = smul.u32 32, %s22
      %p349 = scmp.lt.s32.totalorder %s348, 63
      %s350 = scalar_select %p349, %s348, 63
      %s351 = smul.addr %s350, 8
      %s352 = scalar_lea.vmem %s1, %s351
      %p353 = pneg %p43
      %p354 = pneg %p40
      %s355 = sld [smem:[#allocation3]]
      %p356 = scmp.lt.s32.totalorder %s355, 1
      %s357 = scalar_select %p356, %s355, 1
      %s358 = smul.addr %s357, 4
      %s359 = smul.addr %s358, 4
      %s360 = scalar_lea.vmem %s2, %s359
      %p361 = pneg %p71
      %p362 = pneg %p68
      %s363 = sld [smem:[#allocation3]]
      %p364 = scmp.lt.s32.totalorder %s363, 1
      %s365 = scalar_select %p364, %s363, 1
      %s366 = scalar_lea.vmem %s3, %s365
      %p367 = pneg %p99
      %p368 = pneg %p96
      %s369 = sld [smem:[#allocation3]]
      %p370 = scmp.lt.s32.totalorder %s369, 1
      %s371 = scalar_select %p370, %s369, 1
      %s372 = smul.addr %s371, 16
      %s373 = smul.addr %s372, 4
      %s374 = scalar_lea.vmem %s4, %s373
      %p375 = pneg %p127
      %p376 = pneg %p124
      %s377 = sld [smem:[#allocation3]]
      %p378 = scmp.lt.s32.totalorder %s377, 1
      %s379 = scalar_select %p378, %s377, 1
      %s380 = scalar_lea.vmem %s5, %s379
      %p381 = pneg %p155
      %p382 = pneg %p152
      %p383 = pneg %p176
      %p384 = pneg %p173
      %p385 = pneg %p197
      %p386 = pneg %p194
      %p387 = pneg %p218
      %p388 = pneg %p215
      %p389 = pneg %p239
      %p390 = pneg %p236
      %p391 = pneg %p265
      %p392 = pneg %p262
      %s393 = smul.u32 32, %s22
      %p394 = scmp.lt.s32.totalorder %s393, 63
      %s395 = scalar_select %p394, %s393, 63
      %s396 = smul.addr %s395, 2
      %s397 = smul.addr %s396, 8
      %s398 = scalar_lea.vmem %s10, %s397
      %s399 = smul.u32 32, %s22
      %p400 = scmp.lt.s32.totalorder %s399, 63
      %s401 = scalar_select %p400, %s399, 63
      %s402 = smul.addr %s401, 8
      %s403 = scalar_lea.vmem %s1, %s402
      %s404 = smul.u32 32, %s22
      %s405 = sld [smem:[#allocation3]]
      %p406 = scmp.lt.s32.totalorder %s405, 1
      %s407 = scalar_select %p406, %s405, 1
      %s408 = smul.addr %s407, 4
      %s409 = smul.addr %s408, 4
      %s410 = scalar_lea.vmem %s2, %s409
      %s411 = sld [smem:[#allocation3]]
      %s412 = sld [smem:[#allocation3]]
      %p413 = scmp.lt.s32.totalorder %s412, 1
      %s414 = scalar_select %p413, %s412, 1
      %s415 = scalar_lea.vmem %s3, %s414
      %s416 = sld [smem:[#allocation3]]
      %s417 = sld [smem:[#allocation3]]
      %p418 = scmp.lt.s32.totalorder %s417, 1
      %s419 = scalar_select %p418, %s417, 1
      %s420 = smul.addr %s419, 16
      %s421 = smul.addr %s420, 4
      %s422 = scalar_lea.vmem %s4, %s421
      %s423 = sld [smem:[#allocation3]]
      %s424 = sld [smem:[#allocation3]]
      %p425 = scmp.lt.s32.totalorder %s424, 1
      %s426 = scalar_select %p425, %s424, 1
      %s427 = scalar_lea.vmem %s5, %s426
      %s428 = sld [smem:[#allocation3]]
      %s429 = smul.u32 32, %s22
      %p430 = scmp.lt.s32.totalorder %s429, 63
      %s431 = scalar_select %p430, %s429, 63
      %s432 = smul.addr %s431, 2
      %s433 = smul.addr %s432, 8
      %s434 = scalar_lea.vmem %s10, %s433
      %s435 = smul.u32 32, %s22
      %v437 = vld [vmem:[%s403] sm:$0xff]
      %v438 = vld [vmem:[%s403 + $0x8] sm:$0xff]
      %v439 = vld [vmem:[%s403 + $0x10] sm:$0xff]
      %v440 = vld [vmem:[%s403 + $0x18] sm:$0xff]
      %v441 = vld [vmem:[%s403 + $0x20] sm:$0xff]
      %v442 = vld [vmem:[%s403 + $0x28] sm:$0xff]
      %v443 = vld [vmem:[%s403 + $0x30] sm:$0xff]
      %v444 = vld [vmem:[%s403 + $0x38] sm:$0xff]
      %v445 = vld [vmem:[%s403 + $0x40] sm:$0xff]
      %v446 = vld [vmem:[%s403 + $0x48] sm:$0xff]
      %v447 = vld [vmem:[%s403 + $0x50] sm:$0xff]
      %v448 = vld [vmem:[%s403 + $0x58] sm:$0xff]
      %v449 = vld [vmem:[%s403 + $0x60] sm:$0xff]
      %v450 = vld [vmem:[%s403 + $0x68] sm:$0xff]
      %v451 = vld [vmem:[%s403 + $0x70] sm:$0xff]
      %v452 = vld [vmem:[%s403 + $0x78] sm:$0xff]
      %v453 = vld [vmem:[%s403 + $0x80] sm:$0xff]
      %v454 = vld [vmem:[%s403 + $0x88] sm:$0xff]
      %v455 = vld [vmem:[%s403 + $0x90] sm:$0xff]
      %v456 = vld [vmem:[%s403 + $0x98] sm:$0xff]
      %v457 = vld [vmem:[%s403 + $0xa0] sm:$0xff]
      %v458 = vld [vmem:[%s403 + $0xa8] sm:$0xff]
      %v459 = vld [vmem:[%s403 + $0xb0] sm:$0xff]
      %v460 = vld [vmem:[%s403 + $0xb8] sm:$0xff]
      %v461 = vld [vmem:[%s403 + $0xc0] sm:$0xff]
      %v462 = vld [vmem:[%s403 + $0xc8] sm:$0xff]
      %v463 = vld [vmem:[%s403 + $0xd0] sm:$0xff]
      %v464 = vld [vmem:[%s403 + $0xd8] sm:$0xff]
      %v465 = vld [vmem:[%s403 + $0xe0] sm:$0xff]
      %v466 = vld [vmem:[%s403 + $0xe8] sm:$0xff]
      %v467 = vld [vmem:[%s403 + $0xf0] sm:$0xff]
      %v468 = vld [vmem:[%s403 + $0xf8] sm:$0xff]
      %v469 = vld [vmem:[%s410] sm:$0xf]
      %v470 = vld [vmem:[%s410 + $0x4] sm:$0xf]
      %v471 = vld [vmem:[%s410 + $0x8] sm:$0xf]
      %v472 = vld [vmem:[%s410 + $0xc] sm:$0xf]
      %v473 = vld [vmem:[%s415] sm:$0x1]
      %v474 = vpack.c.bf16 %v438, %v437
      %v475 = vpack.c.bf16 %v440, %v439
      %v476 = vpack.c.bf16 %v442, %v441
      %v477 = vpack.c.bf16 %v444, %v443
      %v478 = vpack.c.bf16 %v446, %v445
      %v479 = vpack.c.bf16 %v448, %v447
      %v480 = vpack.c.bf16 %v450, %v449
      %v481 = vpack.c.bf16 %v452, %v451
      %v482 = vpack.c.bf16 %v454, %v453
      %v483 = vpack.c.bf16 %v456, %v455
      %v484 = vpack.c.bf16 %v458, %v457
      %v485 = vpack.c.bf16 %v460, %v459
      %v486 = vpack.c.bf16 %v462, %v461
      %v487 = vpack.c.bf16 %v464, %v463
      %v488 = vpack.c.bf16 %v466, %v465
      %v489 = vpack.c.bf16 %v468, %v467
      %v491 = vlaneseq
      %v492 = vshrl.u32 %v491, 7
      %v493 = vsub.s32 0, %v492
      %v494 = vrot.slane %v473, %v493
      %v500 = vunpack.c.l.b16 %v469
      %v501 = vunpack.c.l.b16 %v470
      %v502 = vunpack.c.l.b16 %v471
      %v503 = vunpack.c.l.b16 %v472
      %v504 = vpack.c.b16 %v501, %v500
      %v505 = vpack.c.b16 %v503, %v502
      %vm508 = vcmask 261120
      %v510 = vsel %vm508, %v474, 0
      %v513 = vsel %vm508, %v475, 0
      %v516 = vsel %vm508, %v476, 0
      %v519 = vsel %vm508, %v477, 0
      %v522 = vsel %vm508, %v478, 0
      %v525 = vsel %vm508, %v479, 0
      %v528 = vsel %vm508, %v480, 0
      %v531 = vsel %vm508, %v481, 0
      %v534 = vsel %vm508, %v482, 0
      %v537 = vsel %vm508, %v483, 0
      %v540 = vsel %vm508, %v484, 0
      %v543 = vsel %vm508, %v485, 0
      %v546 = vsel %vm508, %v486, 0
      %v549 = vsel %vm508, %v487, 0
      %v552 = vsel %vm508, %v488, 0
      %v555 = vsel %vm508, %v489, 0
      %557 = vmatprep.subr.bf16.mxu0 0
      %558 = vmatpush1.bf16.msra.mxu0 0
      %559 = vmatprep.subr.bf16.mxu0 0
      %560 = vmatpush1.bf16.msra.mxu0 0
      %561 = vmatprep.subr.bf16.mxu0 0
      %562 = vmatpush1.bf16.msra.mxu0 0
      %563 = vmatprep.subr.bf16.mxu0 0
      %564 = vmatpush1.bf16.msra.mxu0 0
      %565 = vmatprep.subr.bf16.mxu0 0
      %566 = vmatpush1.bf16.msra.mxu0 0
      %567 = vmatprep.subr.bf16.mxu0 0
      %568 = vmatpush1.bf16.msra.mxu0 0
      %569 = vmatprep.subr.bf16.mxu0 0
      %570 = vmatpush1.bf16.msra.mxu0 %v505
      %571 = vmatprep.subr.bf16.mxu0 0
      %572 = vmatpush1.bf16.msra.mxu0 %v504
      %573 = vmatprep.subr.bf16.mxu0 0
      %574 = vmatpush2.bf16.msra.mxu0 0
      %575 = vmatprep.subr.bf16.mxu0 0
      %576 = vmatpush2.bf16.msra.mxu0 0
      %577 = vmatprep.subr.bf16.mxu0 0
      %578 = vmatpush2.bf16.msra.mxu0 0
      %579 = vmatprep.subr.bf16.mxu0 0
      %580 = vmatpush2.bf16.msra.mxu0 0
      %581 = vmatprep.subr.bf16.mxu0 0
      %582 = vmatpush2.bf16.msra.mxu0 0
      %583 = vmatprep.subr.bf16.mxu0 0
      %584 = vmatpush2.bf16.msra.mxu0 0
      %585 = vmatprep.subr.bf16.mxu0 0
      %586 = vmatpush2.bf16.msra.mxu0 0
      %587 = vmatprep.subr.bf16.mxu0 0
      %588 = vmatpush2.bf16.msra.mxu0 0
      %589 = vmatprep.mubr.bf16.mxu0 0
      %590 = vmatmul.mubr.bf16.gmra.mxu0 %v510
      %v591 = vpop.f32.mrf.mxu0
      %v592 = vadd.f32 %v494, %v591
      %v593 = vpop.f32.mrf.mxu0
      %v594 = vpop.f32.mrf.mxu0
      %v595 = vadd.f32 %v494, %v594
      %v596 = vpop.f32.mrf.mxu0
      %597 = vmatprep.mubr.bf16.mxu0 0
      %598 = vmatmul.mubr.bf16.gmra.mxu0 %v513
      %v599 = vpop.f32.mrf.mxu0
      %v600 = vadd.f32 %v494, %v599
      %v601 = vpop.f32.mrf.mxu0
      %v602 = vpop.f32.mrf.mxu0
      %v603 = vadd.f32 %v494, %v602
      %v604 = vpop.f32.mrf.mxu0
      %605 = vmatprep.mubr.bf16.mxu0 0
      %606 = vmatmul.mubr.bf16.gmra.mxu0 %v516
      %v607 = vpop.f32.mrf.mxu0
      %v608 = vadd.f32 %v494, %v607
      %v609 = vpop.f32.mrf.mxu0
      %v610 = vpop.f32.mrf.mxu0
      %v611 = vadd.f32 %v494, %v610
      %v612 = vpop.f32.mrf.mxu0
      %613 = vmatprep.mubr.bf16.mxu0 0
      %614 = vmatmul.mubr.bf16.gmra.mxu0 %v519
      %v615 = vpop.f32.mrf.mxu0
      %v616 = vadd.f32 %v494, %v615
      %v617 = vpop.f32.mrf.mxu0
      %v618 = vpop.f32.mrf.mxu0
      %v619 = vadd.f32 %v494, %v618
      %v620 = vpop.f32.mrf.mxu0
      %621 = vmatprep.mubr.bf16.mxu0 0
      %622 = vmatmul.mubr.bf16.gmra.mxu0 %v522
      %v623 = vpop.f32.mrf.mxu0
      %v624 = vadd.f32 %v494, %v623
      %v625 = vpop.f32.mrf.mxu0
      %v626 = vpop.f32.mrf.mxu0
      %v627 = vadd.f32 %v494, %v626
      %v628 = vpop.f32.mrf.mxu0
      %629 = vmatprep.mubr.bf16.mxu0 0
      %630 = vmatmul.mubr.bf16.gmra.mxu0 %v525
      %v631 = vpop.f32.mrf.mxu0
      %v632 = vadd.f32 %v494, %v631
      %v633 = vpop.f32.mrf.mxu0
      %v634 = vpop.f32.mrf.mxu0
      %v635 = vadd.f32 %v494, %v634
      %v636 = vpop.f32.mrf.mxu0
      %637 = vmatprep.mubr.bf16.mxu0 0
      %638 = vmatmul.mubr.bf16.gmra.mxu0 %v528
      %v639 = vpop.f32.mrf.mxu0
      %v640 = vadd.f32 %v494, %v639
      %v641 = vpop.f32.mrf.mxu0
      %v642 = vpop.f32.mrf.mxu0
      %v643 = vadd.f32 %v494, %v642
      %v644 = vpop.f32.mrf.mxu0
      %645 = vmatprep.mubr.bf16.mxu0 0
      %646 = vmatmul.mubr.bf16.gmra.mxu0 %v531
      %v647 = vpop.f32.mrf.mxu0
      %v648 = vadd.f32 %v494, %v647
      %v649 = vpop.f32.mrf.mxu0
      %v650 = vpop.f32.mrf.mxu0
      %v651 = vadd.f32 %v494, %v650
      %v652 = vpop.f32.mrf.mxu0
      %653 = vmatprep.mubr.bf16.mxu0 0
      %654 = vmatmul.mubr.bf16.gmra.mxu0 %v534
      %v655 = vpop.f32.mrf.mxu0
      %v656 = vadd.f32 %v494, %v655
      %v657 = vpop.f32.mrf.mxu0
      %v658 = vpop.f32.mrf.mxu0
      %v659 = vadd.f32 %v494, %v658
      %v660 = vpop.f32.mrf.mxu0
      %661 = vmatprep.mubr.bf16.mxu0 0
      %662 = vmatmul.mubr.bf16.gmra.mxu0 %v537
      %v663 = vpop.f32.mrf.mxu0
      %v664 = vadd.f32 %v494, %v663
      %v665 = vpop.f32.mrf.mxu0
      %v666 = vpop.f32.mrf.mxu0
      %v667 = vadd.f32 %v494, %v666
      %v668 = vpop.f32.mrf.mxu0
      %669 = vmatprep.mubr.bf16.mxu0 0
      %670 = vmatmul.mubr.bf16.gmra.mxu0 %v540
      %v671 = vpop.f32.mrf.mxu0
      %v672 = vadd.f32 %v494, %v671
      %v673 = vpop.f32.mrf.mxu0
      %v674 = vpop.f32.mrf.mxu0
      %v675 = vadd.f32 %v494, %v674
      %v676 = vpop.f32.mrf.mxu0
      %677 = vmatprep.mubr.bf16.mxu0 0
      %678 = vmatmul.mubr.bf16.gmra.mxu0 %v543
      %v679 = vpop.f32.mrf.mxu0
      %v680 = vadd.f32 %v494, %v679
      %v681 = vpop.f32.mrf.mxu0
      %v682 = vpop.f32.mrf.mxu0
      %v683 = vadd.f32 %v494, %v682
      %v684 = vpop.f32.mrf.mxu0
      %685 = vmatprep.mubr.bf16.mxu0 0
      %686 = vmatmul.mubr.bf16.gmra.mxu0 %v546
      %v687 = vpop.f32.mrf.mxu0
      %v688 = vadd.f32 %v494, %v687
      %v689 = vpop.f32.mrf.mxu0
      %v690 = vpop.f32.mrf.mxu0
      %v691 = vadd.f32 %v494, %v690
      %v692 = vpop.f32.mrf.mxu0
      %693 = vmatprep.mubr.bf16.mxu0 0
      %694 = vmatmul.mubr.bf16.gmra.mxu0 %v549
      %v695 = vpop.f32.mrf.mxu0
      %v696 = vadd.f32 %v494, %v695
      %v697 = vpop.f32.mrf.mxu0
      %v698 = vpop.f32.mrf.mxu0
      %v699 = vadd.f32 %v494, %v698
      %v700 = vpop.f32.mrf.mxu0
      %701 = vmatprep.mubr.bf16.mxu0 0
      %702 = vmatmul.mubr.bf16.gmra.mxu0 %v552
      %v703 = vpop.f32.mrf.mxu0
      %v704 = vadd.f32 %v494, %v703
      %v705 = vpop.f32.mrf.mxu0
      %v706 = vpop.f32.mrf.mxu0
      %v707 = vadd.f32 %v494, %v706
      %v708 = vpop.f32.mrf.mxu0
      %709 = vmatprep.mubr.bf16.mxu0 0
      %710 = vmatmul.mubr.bf16.gmra.mxu0 %v555
      %v711 = vpop.f32.mrf.mxu0
      %v712 = vadd.f32 %v494, %v711
      %v713 = vpop.f32.mrf.mxu0
      %v714 = vpop.f32.mrf.mxu0
      %v715 = vadd.f32 %v494, %v714
      %v716 = vpop.f32.mrf.mxu0
      %717 = vdwg.mxu0
      %v718 = vmax.f32 %v592, 0.0
      %v719 = vmax.f32 %v595, 0.0
      %v720 = vmax.f32 %v600, 0.0
      %v721 = vmax.f32 %v603, 0.0
      %v722 = vmax.f32 %v608, 0.0
      %v723 = vmax.f32 %v611, 0.0
      %v724 = vmax.f32 %v616, 0.0
      %v725 = vmax.f32 %v619, 0.0
      %v726 = vmax.f32 %v624, 0.0
      %v727 = vmax.f32 %v627, 0.0
      %v728 = vmax.f32 %v632, 0.0
      %v729 = vmax.f32 %v635, 0.0
      %v730 = vmax.f32 %v640, 0.0
      %v731 = vmax.f32 %v643, 0.0
      %v732 = vmax.f32 %v648, 0.0
      %v733 = vmax.f32 %v651, 0.0
      %v734 = vmax.f32 %v656, 0.0
      %v735 = vmax.f32 %v659, 0.0
      %v736 = vmax.f32 %v664, 0.0
      %v737 = vmax.f32 %v667, 0.0
      %v738 = vmax.f32 %v672, 0.0
      %v739 = vmax.f32 %v675, 0.0
      %v740 = vmax.f32 %v680, 0.0
      %v741 = vmax.f32 %v683, 0.0
      %v742 = vmax.f32 %v688, 0.0
      %v743 = vmax.f32 %v691, 0.0
      %v744 = vmax.f32 %v696, 0.0
      %v745 = vmax.f32 %v699, 0.0
      %v746 = vmax.f32 %v704, 0.0
      %v747 = vmax.f32 %v707, 0.0
      %v748 = vmax.f32 %v712, 0.0
      %v749 = vmax.f32 %v715, 0.0
      %v750 = vld [vmem:[%s422] sm:$0xf]
      %v751 = vld [vmem:[%s422 + $0x4] sm:$0xf]
      %v752 = vld [vmem:[%s422 + $0x8] sm:$0xf]
      %v753 = vld [vmem:[%s422 + $0xc] sm:$0xf]
      %v754 = vld [vmem:[%s422 + $0x10] sm:$0xf]
      %v755 = vld [vmem:[%s422 + $0x14] sm:$0xf]
      %v756 = vld [vmem:[%s422 + $0x18] sm:$0xf]
      %v757 = vld [vmem:[%s422 + $0x1c] sm:$0xf]
      %v758 = vld [vmem:[%s422 + $0x20] sm:$0xf]
      %v759 = vld [vmem:[%s422 + $0x24] sm:$0xf]
      %v760 = vld [vmem:[%s422 + $0x28] sm:$0xf]
      %v761 = vld [vmem:[%s422 + $0x2c] sm:$0xf]
      %v762 = vld [vmem:[%s422 + $0x30] sm:$0xf]
      %v763 = vld [vmem:[%s422 + $0x34] sm:$0xf]
      %v764 = vld [vmem:[%s422 + $0x38] sm:$0xf]
      %v765 = vld [vmem:[%s422 + $0x3c] sm:$0xf]
      %v766 = vld [vmem:[%s427] sm:$0x1]
      %v767 = vpack.c.bf16 %v719, %v718
      %v768 = vpack.c.bf16 %v721, %v720
      %v769 = vpack.c.bf16 %v723, %v722
      %v770 = vpack.c.bf16 %v725, %v724
      %v771 = vpack.c.bf16 %v727, %v726
      %v772 = vpack.c.bf16 %v729, %v728
      %v773 = vpack.c.bf16 %v731, %v730
      %v774 = vpack.c.bf16 %v733, %v732
      %v775 = vpack.c.bf16 %v735, %v734
      %v776 = vpack.c.bf16 %v737, %v736
      %v777 = vpack.c.bf16 %v739, %v738
      %v778 = vpack.c.bf16 %v741, %v740
      %v779 = vpack.c.bf16 %v743, %v742
      %v780 = vpack.c.bf16 %v745, %v744
      %v781 = vpack.c.bf16 %v747, %v746
      %v782 = vpack.c.bf16 %v749, %v748
      %v784 = vlaneseq
      %v785 = vshrl.u32 %v784, 7
      %v786 = vsub.s32 0, %v785
      %v787 = vrot.slane %v766, %v786
      %v805 = vunpack.c.l.b16 %v750
      %v806 = vunpack.c.l.b16 %v751
      %v807 = vunpack.c.l.b16 %v752
      %v808 = vunpack.c.l.b16 %v753
      %v809 = vunpack.c.l.b16 %v754
      %v810 = vunpack.c.l.b16 %v755
      %v811 = vunpack.c.l.b16 %v756
      %v812 = vunpack.c.l.b16 %v757
      %v813 = vunpack.c.l.b16 %v758
      %v814 = vunpack.c.l.b16 %v759
      %v815 = vunpack.c.l.b16 %v760
      %v816 = vunpack.c.l.b16 %v761
      %v817 = vunpack.c.l.b16 %v762
      %v818 = vunpack.c.l.b16 %v763
      %v819 = vunpack.c.l.b16 %v764
      %v820 = vunpack.c.l.b16 %v765
      %v821 = vpack.c.b16 %v806, %v805
      %v822 = vpack.c.b16 %v808, %v807
      %v823 = vpack.c.b16 %v810, %v809
      %v824 = vpack.c.b16 %v812, %v811
      %v825 = vpack.c.b16 %v814, %v813
      %v826 = vpack.c.b16 %v816, %v815
      %v827 = vpack.c.b16 %v818, %v817
      %v828 = vpack.c.b16 %v820, %v819
      %837 = vmatprep.subr.bf16.mxu0 0
      %838 = vmatpush1.bf16.msra.mxu0 %v828
      %839 = vmatprep.subr.bf16.mxu0 0
      %840 = vmatpush1.bf16.msra.mxu0 %v827
      %841 = vmatprep.subr.bf16.mxu0 0
      %842 = vmatpush1.bf16.msra.mxu0 %v826
      %843 = vmatprep.subr.bf16.mxu0 0
      %844 = vmatpush1.bf16.msra.mxu0 %v825
      %845 = vmatprep.subr.bf16.mxu0 0
      %846 = vmatpush1.bf16.msra.mxu0 %v824
      %847 = vmatprep.subr.bf16.mxu0 0
      %848 = vmatpush1.bf16.msra.mxu0 %v823
      %849 = vmatprep.subr.bf16.mxu0 0
      %850 = vmatpush1.bf16.msra.mxu0 %v822
      %851 = vmatprep.subr.bf16.mxu0 0
      %852 = vmatpush1.bf16.msra.mxu0 %v821
      %853 = vmatprep.subr.bf16.mxu0 0
      %854 = vmatpush2.bf16.msra.mxu0 0
      %855 = vmatprep.subr.bf16.mxu0 0
      %856 = vmatpush2.bf16.msra.mxu0 0
      %857 = vmatprep.subr.bf16.mxu0 0
      %858 = vmatpush2.bf16.msra.mxu0 0
      %859 = vmatprep.subr.bf16.mxu0 0
      %860 = vmatpush2.bf16.msra.mxu0 0
      %861 = vmatprep.subr.bf16.mxu0 0
      %862 = vmatpush2.bf16.msra.mxu0 0
      %863 = vmatprep.subr.bf16.mxu0 0
      %864 = vmatpush2.bf16.msra.mxu0 0
      %865 = vmatprep.subr.bf16.mxu0 0
      %866 = vmatpush2.bf16.msra.mxu0 0
      %867 = vmatprep.subr.bf16.mxu0 0
      %868 = vmatpush2.bf16.msra.mxu0 0
      %869 = vmatprep.mubr.bf16.mxu0 0
      %870 = vmatmul.mubr.bf16.gmra.mxu0 %v767
      %v871 = vpop.f32.mrf.mxu0
      %v872 = vadd.f32 %v787, %v871
      %v873 = vpop.f32.mrf.mxu0
      %v874 = vpop.f32.mrf.mxu0
      %v875 = vadd.f32 %v787, %v874
      %v876 = vpop.f32.mrf.mxu0
      %877 = vmatprep.mubr.bf16.mxu0 0
      %878 = vmatmul.mubr.bf16.gmra.mxu0 %v768
      %v879 = vpop.f32.mrf.mxu0
      %v880 = vadd.f32 %v787, %v879
      %v881 = vpop.f32.mrf.mxu0
      %v882 = vpop.f32.mrf.mxu0
      %v883 = vadd.f32 %v787, %v882
      %v884 = vpop.f32.mrf.mxu0
      %885 = vmatprep.mubr.bf16.mxu0 0
      %886 = vmatmul.mubr.bf16.gmra.mxu0 %v769
      %v887 = vpop.f32.mrf.mxu0
      %v888 = vadd.f32 %v787, %v887
      %v889 = vpop.f32.mrf.mxu0
      %v890 = vpop.f32.mrf.mxu0
      %v891 = vadd.f32 %v787, %v890
      %v892 = vpop.f32.mrf.mxu0
      %893 = vmatprep.mubr.bf16.mxu0 0
      %894 = vmatmul.mubr.bf16.gmra.mxu0 %v770
      %v895 = vpop.f32.mrf.mxu0
      %v896 = vadd.f32 %v787, %v895
      %v897 = vpop.f32.mrf.mxu0
      %v898 = vpop.f32.mrf.mxu0
      %v899 = vadd.f32 %v787, %v898
      %v900 = vpop.f32.mrf.mxu0
      %901 = vmatprep.mubr.bf16.mxu0 0
      %902 = vmatmul.mubr.bf16.gmra.mxu0 %v771
      %v903 = vpop.f32.mrf.mxu0
      %v904 = vadd.f32 %v787, %v903
      %v905 = vpop.f32.mrf.mxu0
      %v906 = vpop.f32.mrf.mxu0
      %v907 = vadd.f32 %v787, %v906
      %v908 = vpop.f32.mrf.mxu0
      %909 = vmatprep.mubr.bf16.mxu0 0
      %910 = vmatmul.mubr.bf16.gmra.mxu0 %v772
      %v911 = vpop.f32.mrf.mxu0
      %v912 = vadd.f32 %v787, %v911
      %v913 = vpop.f32.mrf.mxu0
      %v914 = vpop.f32.mrf.mxu0
      %v915 = vadd.f32 %v787, %v914
      %v916 = vpop.f32.mrf.mxu0
      %917 = vmatprep.mubr.bf16.mxu0 0
      %918 = vmatmul.mubr.bf16.gmra.mxu0 %v773
      %v919 = vpop.f32.mrf.mxu0
      %v920 = vadd.f32 %v787, %v919
      %v921 = vpop.f32.mrf.mxu0
      %v922 = vpop.f32.mrf.mxu0
      %v923 = vadd.f32 %v787, %v922
      %v924 = vpop.f32.mrf.mxu0
      %925 = vmatprep.mubr.bf16.mxu0 0
      %926 = vmatmul.mubr.bf16.gmra.mxu0 %v774
      %v927 = vpop.f32.mrf.mxu0
      %v928 = vadd.f32 %v787, %v927
      %v929 = vpop.f32.mrf.mxu0
      %v930 = vpop.f32.mrf.mxu0
      %v931 = vadd.f32 %v787, %v930
      %v932 = vpop.f32.mrf.mxu0
      %933 = vmatprep.mubr.bf16.mxu0 0
      %934 = vmatmul.mubr.bf16.gmra.mxu0 %v775
      %v935 = vpop.f32.mrf.mxu0
      %v936 = vadd.f32 %v787, %v935
      %v937 = vpop.f32.mrf.mxu0
      %v938 = vpop.f32.mrf.mxu0
      %v939 = vadd.f32 %v787, %v938
      %v940 = vpop.f32.mrf.mxu0
      %941 = vmatprep.mubr.bf16.mxu0 0
      %942 = vmatmul.mubr.bf16.gmra.mxu0 %v776
      %v943 = vpop.f32.mrf.mxu0
      %v944 = vadd.f32 %v787, %v943
      %v945 = vpop.f32.mrf.mxu0
      %v946 = vpop.f32.mrf.mxu0
      %v947 = vadd.f32 %v787, %v946
      %v948 = vpop.f32.mrf.mxu0
      %949 = vmatprep.mubr.bf16.mxu0 0
      %950 = vmatmul.mubr.bf16.gmra.mxu0 %v777
      %v951 = vpop.f32.mrf.mxu0
      %v952 = vadd.f32 %v787, %v951
      %v953 = vpop.f32.mrf.mxu0
      %v954 = vpop.f32.mrf.mxu0
      %v955 = vadd.f32 %v787, %v954
      %v956 = vpop.f32.mrf.mxu0
      %957 = vmatprep.mubr.bf16.mxu0 0
      %958 = vmatmul.mubr.bf16.gmra.mxu0 %v778
      %v959 = vpop.f32.mrf.mxu0
      %v960 = vadd.f32 %v787, %v959
      %v961 = vpop.f32.mrf.mxu0
      %v962 = vpop.f32.mrf.mxu0
      %v963 = vadd.f32 %v787, %v962
      %v964 = vpop.f32.mrf.mxu0
      %965 = vmatprep.mubr.bf16.mxu0 0
      %966 = vmatmul.mubr.bf16.gmra.mxu0 %v779
      %v967 = vpop.f32.mrf.mxu0
      %v968 = vadd.f32 %v787, %v967
      %v969 = vpop.f32.mrf.mxu0
      %v970 = vpop.f32.mrf.mxu0
      %v971 = vadd.f32 %v787, %v970
      %v972 = vpop.f32.mrf.mxu0
      %973 = vmatprep.mubr.bf16.mxu0 0
      %974 = vmatmul.mubr.bf16.gmra.mxu0 %v780
      %v975 = vpop.f32.mrf.mxu0
      %v976 = vadd.f32 %v787, %v975
      %v977 = vpop.f32.mrf.mxu0
      %v978 = vpop.f32.mrf.mxu0
      %v979 = vadd.f32 %v787, %v978
      %v980 = vpop.f32.mrf.mxu0
      %981 = vmatprep.mubr.bf16.mxu0 0
      %982 = vmatmul.mubr.bf16.gmra.mxu0 %v781
      %v983 = vpop.f32.mrf.mxu0
      %v984 = vadd.f32 %v787, %v983
      %v985 = vpop.f32.mrf.mxu0
      %v986 = vpop.f32.mrf.mxu0
      %v987 = vadd.f32 %v787, %v986
      %v988 = vpop.f32.mrf.mxu0
      %989 = vmatprep.mubr.bf16.mxu0 0
      %990 = vmatmul.mubr.bf16.gmra.mxu0 %v782
      %v991 = vpop.f32.mrf.mxu0
      %v992 = vadd.f32 %v787, %v991
      %v993 = vpop.f32.mrf.mxu0
      %v994 = vpop.f32.mrf.mxu0
      %v995 = vadd.f32 %v787, %v994
      %v996 = vpop.f32.mrf.mxu0
      %997 = vdwg.mxu0
      %v998 = vmax.f32 %v872, 0.0
      %v999 = vmax.f32 %v875, 0.0
      %v1000 = vmax.f32 %v880, 0.0
      %v1001 = vmax.f32 %v883, 0.0
      %v1002 = vmax.f32 %v888, 0.0
      %v1003 = vmax.f32 %v891, 0.0
      %v1004 = vmax.f32 %v896, 0.0
      %v1005 = vmax.f32 %v899, 0.0
      %v1006 = vmax.f32 %v904, 0.0
      %v1007 = vmax.f32 %v907, 0.0
      %v1008 = vmax.f32 %v912, 0.0
      %v1009 = vmax.f32 %v915, 0.0
      %v1010 = vmax.f32 %v920, 0.0
      %v1011 = vmax.f32 %v923, 0.0
      %v1012 = vmax.f32 %v928, 0.0
      %v1013 = vmax.f32 %v931, 0.0
      %v1014 = vmax.f32 %v936, 0.0
      %v1015 = vmax.f32 %v939, 0.0
      %v1016 = vmax.f32 %v944, 0.0
      %v1017 = vmax.f32 %v947, 0.0
      %v1018 = vmax.f32 %v952, 0.0
      %v1019 = vmax.f32 %v955, 0.0
      %v1020 = vmax.f32 %v960, 0.0
      %v1021 = vmax.f32 %v963, 0.0
      %v1022 = vmax.f32 %v968, 0.0
      %v1023 = vmax.f32 %v971, 0.0
      %v1024 = vmax.f32 %v976, 0.0
      %v1025 = vmax.f32 %v979, 0.0
      %v1026 = vmax.f32 %v984, 0.0
      %v1027 = vmax.f32 %v987, 0.0
      %v1028 = vmax.f32 %v992, 0.0
      %v1029 = vmax.f32 %v995, 0.0
      %v1030 = vld [vmem:[%s6] sm:$0xf]
      %v1031 = vld [vmem:[%s6 + $0x4] sm:$0xf]
      %v1032 = vld [vmem:[%s6 + $0x8] sm:$0xf]
      %v1033 = vld [vmem:[%s6 + $0xc] sm:$0xf]
      %v1034 = vld [vmem:[%s6 + $0x10] sm:$0xf]
      %v1035 = vld [vmem:[%s6 + $0x14] sm:$0xf]
      %v1036 = vld [vmem:[%s6 + $0x18] sm:$0xf]
      %v1037 = vld [vmem:[%s6 + $0x1c] sm:$0xf]
      %v1038 = vld [vmem:[%s6 + $0x20] sm:$0xf]
      %v1039 = vld [vmem:[%s6 + $0x24] sm:$0xf]
      %v1040 = vld [vmem:[%s6 + $0x28] sm:$0xf]
      %v1041 = vld [vmem:[%s6 + $0x2c] sm:$0xf]
      %v1042 = vld [vmem:[%s6 + $0x30] sm:$0xf]
      %v1043 = vld [vmem:[%s6 + $0x34] sm:$0xf]
      %v1044 = vld [vmem:[%s6 + $0x38] sm:$0xf]
      %v1045 = vld [vmem:[%s6 + $0x3c] sm:$0xf]
      %v1046 = vld [vmem:[%s7] sm:$0x1]
      %v1047 = vpack.c.bf16 %v999, %v998
      %v1048 = vpack.c.bf16 %v1001, %v1000
      %v1049 = vpack.c.bf16 %v1003, %v1002
      %v1050 = vpack.c.bf16 %v1005, %v1004
      %v1051 = vpack.c.bf16 %v1007, %v1006
      %v1052 = vpack.c.bf16 %v1009, %v1008
      %v1053 = vpack.c.bf16 %v1011, %v1010
      %v1054 = vpack.c.bf16 %v1013, %v1012
      %v1055 = vpack.c.bf16 %v1015, %v1014
      %v1056 = vpack.c.bf16 %v1017, %v1016
      %v1057 = vpack.c.bf16 %v1019, %v1018
      %v1058 = vpack.c.bf16 %v1021, %v1020
      %v1059 = vpack.c.bf16 %v1023, %v1022
      %v1060 = vpack.c.bf16 %v1025, %v1024
      %v1061 = vpack.c.bf16 %v1027, %v1026
      %v1062 = vpack.c.bf16 %v1029, %v1028
      %v1064 = vlaneseq
      %v1065 = vshrl.u32 %v1064, 7
      %v1066 = vsub.s32 0, %v1065
      %v1067 = vrot.slane %v1046, %v1066
      %v1085 = vunpack.c.l.b16 %v1030
      %v1086 = vunpack.c.l.b16 %v1031
      %v1087 = vunpack.c.l.b16 %v1032
      %v1088 = vunpack.c.l.b16 %v1033
      %v1089 = vunpack.c.l.b16 %v1034
      %v1090 = vunpack.c.l.b16 %v1035
      %v1091 = vunpack.c.l.b16 %v1036
      %v1092 = vunpack.c.l.b16 %v1037
      %v1093 = vunpack.c.l.b16 %v1038
      %v1094 = vunpack.c.l.b16 %v1039
      %v1095 = vunpack.c.l.b16 %v1040
      %v1096 = vunpack.c.l.b16 %v1041
      %v1097 = vunpack.c.l.b16 %v1042
      %v1098 = vunpack.c.l.b16 %v1043
      %v1099 = vunpack.c.l.b16 %v1044
      %v1100 = vunpack.c.l.b16 %v1045
      %v1101 = vpack.c.b16 %v1086, %v1085
      %v1102 = vpack.c.b16 %v1088, %v1087
      %v1103 = vpack.c.b16 %v1090, %v1089
      %v1104 = vpack.c.b16 %v1092, %v1091
      %v1105 = vpack.c.b16 %v1094, %v1093
      %v1106 = vpack.c.b16 %v1096, %v1095
      %v1107 = vpack.c.b16 %v1098, %v1097
      %v1108 = vpack.c.b16 %v1100, %v1099
      %1117 = vmatprep.subr.bf16.mxu0 0
      %1118 = vmatpush1.bf16.msra.mxu0 %v1108
      %1119 = vmatprep.subr.bf16.mxu0 0
      %1120 = vmatpush1.bf16.msra.mxu0 %v1107
      %1121 = vmatprep.subr.bf16.mxu0 0
      %1122 = vmatpush1.bf16.msra.mxu0 %v1106
      %1123 = vmatprep.subr.bf16.mxu0 0
      %1124 = vmatpush1.bf16.msra.mxu0 %v1105
      %1125 = vmatprep.subr.bf16.mxu0 0
      %1126 = vmatpush1.bf16.msra.mxu0 %v1104
      %1127 = vmatprep.subr.bf16.mxu0 0
      %1128 = vmatpush1.bf16.msra.mxu0 %v1103
      %1129 = vmatprep.subr.bf16.mxu0 0
      %1130 = vmatpush1.bf16.msra.mxu0 %v1102
      %1131 = vmatprep.subr.bf16.mxu0 0
      %1132 = vmatpush1.bf16.msra.mxu0 %v1101
      %1133 = vmatprep.subr.bf16.mxu0 0
      %1134 = vmatpush2.bf16.msra.mxu0 0
      %1135 = vmatprep.subr.bf16.mxu0 0
      %1136 = vmatpush2.bf16.msra.mxu0 0
      %1137 = vmatprep.subr.bf16.mxu0 0
      %1138 = vmatpush2.bf16.msra.mxu0 0
      %1139 = vmatprep.subr.bf16.mxu0 0
      %1140 = vmatpush2.bf16.msra.mxu0 0
      %1141 = vmatprep.subr.bf16.mxu0 0
      %1142 = vmatpush2.bf16.msra.mxu0 0
      %1143 = vmatprep.subr.bf16.mxu0 0
      %1144 = vmatpush2.bf16.msra.mxu0 0
      %1145 = vmatprep.subr.bf16.mxu0 0
      %1146 = vmatpush2.bf16.msra.mxu0 0
      %1147 = vmatprep.subr.bf16.mxu0 0
      %1148 = vmatpush2.bf16.msra.mxu0 0
      %1149 = vmatprep.mubr.bf16.mxu0 0
      %1150 = vmatmul.mubr.bf16.gmra.mxu0 %v1047
      %v1151 = vpop.f32.mrf.mxu0
      %v1152 = vadd.f32 %v1067, %v1151
      %v1153 = vpop.f32.mrf.mxu0
      %v1154 = vpop.f32.mrf.mxu0
      %v1155 = vadd.f32 %v1067, %v1154
      %v1156 = vpop.f32.mrf.mxu0
      %1157 = vmatprep.mubr.bf16.mxu0 0
      %1158 = vmatmul.mubr.bf16.gmra.mxu0 %v1048
      %v1159 = vpop.f32.mrf.mxu0
      %v1160 = vadd.f32 %v1067, %v1159
      %v1161 = vpop.f32.mrf.mxu0
      %v1162 = vpop.f32.mrf.mxu0
      %v1163 = vadd.f32 %v1067, %v1162
      %v1164 = vpop.f32.mrf.mxu0
      %1165 = vmatprep.mubr.bf16.mxu0 0
      %1166 = vmatmul.mubr.bf16.gmra.mxu0 %v1049
      %v1167 = vpop.f32.mrf.mxu0
      %v1168 = vadd.f32 %v1067, %v1167
      %v1169 = vpop.f32.mrf.mxu0
      %v1170 = vpop.f32.mrf.mxu0
      %v1171 = vadd.f32 %v1067, %v1170
      %v1172 = vpop.f32.mrf.mxu0
      %1173 = vmatprep.mubr.bf16.mxu0 0
      %1174 = vmatmul.mubr.bf16.gmra.mxu0 %v1050
      %v1175 = vpop.f32.mrf.mxu0
      %v1176 = vadd.f32 %v1067, %v1175
      %v1177 = vpop.f32.mrf.mxu0
      %v1178 = vpop.f32.mrf.mxu0
      %v1179 = vadd.f32 %v1067, %v1178
      %v1180 = vpop.f32.mrf.mxu0
      %1181 = vmatprep.mubr.bf16.mxu0 0
      %1182 = vmatmul.mubr.bf16.gmra.mxu0 %v1051
      %v1183 = vpop.f32.mrf.mxu0
      %v1184 = vadd.f32 %v1067, %v1183
      %v1185 = vpop.f32.mrf.mxu0
      %v1186 = vpop.f32.mrf.mxu0
      %v1187 = vadd.f32 %v1067, %v1186
      %v1188 = vpop.f32.mrf.mxu0
      %1189 = vmatprep.mubr.bf16.mxu0 0
      %1190 = vmatmul.mubr.bf16.gmra.mxu0 %v1052
      %v1191 = vpop.f32.mrf.mxu0
      %v1192 = vadd.f32 %v1067, %v1191
      %v1193 = vpop.f32.mrf.mxu0
      %v1194 = vpop.f32.mrf.mxu0
      %v1195 = vadd.f32 %v1067, %v1194
      %v1196 = vpop.f32.mrf.mxu0
      %1197 = vmatprep.mubr.bf16.mxu0 0
      %1198 = vmatmul.mubr.bf16.gmra.mxu0 %v1053
      %v1199 = vpop.f32.mrf.mxu0
      %v1200 = vadd.f32 %v1067, %v1199
      %v1201 = vpop.f32.mrf.mxu0
      %v1202 = vpop.f32.mrf.mxu0
      %v1203 = vadd.f32 %v1067, %v1202
      %v1204 = vpop.f32.mrf.mxu0
      %1205 = vmatprep.mubr.bf16.mxu0 0
      %1206 = vmatmul.mubr.bf16.gmra.mxu0 %v1054
      %v1207 = vpop.f32.mrf.mxu0
      %v1208 = vadd.f32 %v1067, %v1207
      %v1209 = vpop.f32.mrf.mxu0
      %v1210 = vpop.f32.mrf.mxu0
      %v1211 = vadd.f32 %v1067, %v1210
      %v1212 = vpop.f32.mrf.mxu0
      %1213 = vmatprep.mubr.bf16.mxu0 0
      %1214 = vmatmul.mubr.bf16.gmra.mxu0 %v1055
      %v1215 = vpop.f32.mrf.mxu0
      %v1216 = vadd.f32 %v1067, %v1215
      %v1217 = vpop.f32.mrf.mxu0
      %v1218 = vpop.f32.mrf.mxu0
      %v1219 = vadd.f32 %v1067, %v1218
      %v1220 = vpop.f32.mrf.mxu0
      %1221 = vmatprep.mubr.bf16.mxu0 0
      %1222 = vmatmul.mubr.bf16.gmra.mxu0 %v1056
      %v1223 = vpop.f32.mrf.mxu0
      %v1224 = vadd.f32 %v1067, %v1223
      %v1225 = vpop.f32.mrf.mxu0
      %v1226 = vpop.f32.mrf.mxu0
      %v1227 = vadd.f32 %v1067, %v1226
      %v1228 = vpop.f32.mrf.mxu0
      %1229 = vmatprep.mubr.bf16.mxu0 0
      %1230 = vmatmul.mubr.bf16.gmra.mxu0 %v1057
      %v1231 = vpop.f32.mrf.mxu0
      %v1232 = vadd.f32 %v1067, %v1231
      %v1233 = vpop.f32.mrf.mxu0
      %v1234 = vpop.f32.mrf.mxu0
      %v1235 = vadd.f32 %v1067, %v1234
      %v1236 = vpop.f32.mrf.mxu0
      %1237 = vmatprep.mubr.bf16.mxu0 0
      %1238 = vmatmul.mubr.bf16.gmra.mxu0 %v1058
      %v1239 = vpop.f32.mrf.mxu0
      %v1240 = vadd.f32 %v1067, %v1239
      %v1241 = vpop.f32.mrf.mxu0
      %v1242 = vpop.f32.mrf.mxu0
      %v1243 = vadd.f32 %v1067, %v1242
      %v1244 = vpop.f32.mrf.mxu0
      %1245 = vmatprep.mubr.bf16.mxu0 0
      %1246 = vmatmul.mubr.bf16.gmra.mxu0 %v1059
      %v1247 = vpop.f32.mrf.mxu0
      %v1248 = vadd.f32 %v1067, %v1247
      %v1249 = vpop.f32.mrf.mxu0
      %v1250 = vpop.f32.mrf.mxu0
      %v1251 = vadd.f32 %v1067, %v1250
      %v1252 = vpop.f32.mrf.mxu0
      %1253 = vmatprep.mubr.bf16.mxu0 0
      %1254 = vmatmul.mubr.bf16.gmra.mxu0 %v1060
      %v1255 = vpop.f32.mrf.mxu0
      %v1256 = vadd.f32 %v1067, %v1255
      %v1257 = vpop.f32.mrf.mxu0
      %v1258 = vpop.f32.mrf.mxu0
      %v1259 = vadd.f32 %v1067, %v1258
      %v1260 = vpop.f32.mrf.mxu0
      %1261 = vmatprep.mubr.bf16.mxu0 0
      %1262 = vmatmul.mubr.bf16.gmra.mxu0 %v1061
      %v1263 = vpop.f32.mrf.mxu0
      %v1264 = vadd.f32 %v1067, %v1263
      %v1265 = vpop.f32.mrf.mxu0
      %v1266 = vpop.f32.mrf.mxu0
      %v1267 = vadd.f32 %v1067, %v1266
      %v1268 = vpop.f32.mrf.mxu0
      %1269 = vmatprep.mubr.bf16.mxu0 0
      %1270 = vmatmul.mubr.bf16.gmra.mxu0 %v1062
      %v1271 = vpop.f32.mrf.mxu0
      %v1272 = vadd.f32 %v1067, %v1271
      %v1273 = vpop.f32.mrf.mxu0
      %v1274 = vpop.f32.mrf.mxu0
      %v1275 = vadd.f32 %v1067, %v1274
      %v1276 = vpop.f32.mrf.mxu0
      %1277 = vdwg.mxu0
      %v1278 = vmax.f32 %v1152, 0.0
      %v1279 = vmax.f32 %v1155, 0.0
      %v1280 = vmax.f32 %v1160, 0.0
      %v1281 = vmax.f32 %v1163, 0.0
      %v1282 = vmax.f32 %v1168, 0.0
      %v1283 = vmax.f32 %v1171, 0.0
      %v1284 = vmax.f32 %v1176, 0.0
      %v1285 = vmax.f32 %v1179, 0.0
      %v1286 = vmax.f32 %v1184, 0.0
      %v1287 = vmax.f32 %v1187, 0.0
      %v1288 = vmax.f32 %v1192, 0.0
      %v1289 = vmax.f32 %v1195, 0.0
      %v1290 = vmax.f32 %v1200, 0.0
      %v1291 = vmax.f32 %v1203, 0.0
      %v1292 = vmax.f32 %v1208, 0.0
      %v1293 = vmax.f32 %v1211, 0.0
      %v1294 = vmax.f32 %v1216, 0.0
      %v1295 = vmax.f32 %v1219, 0.0
      %v1296 = vmax.f32 %v1224, 0.0
      %v1297 = vmax.f32 %v1227, 0.0
      %v1298 = vmax.f32 %v1232, 0.0
      %v1299 = vmax.f32 %v1235, 0.0
      %v1300 = vmax.f32 %v1240, 0.0
      %v1301 = vmax.f32 %v1243, 0.0
      %v1302 = vmax.f32 %v1248, 0.0
      %v1303 = vmax.f32 %v1251, 0.0
      %v1304 = vmax.f32 %v1256, 0.0
      %v1305 = vmax.f32 %v1259, 0.0
      %v1306 = vmax.f32 %v1264, 0.0
      %v1307 = vmax.f32 %v1267, 0.0
      %v1308 = vmax.f32 %v1272, 0.0
      %v1309 = vmax.f32 %v1275, 0.0
      %v1310 = vadd.f32 %v1278, %v998
      %v1311 = vadd.f32 %v1279, %v999
      %v1312 = vadd.f32 %v1280, %v1000
      %v1313 = vadd.f32 %v1281, %v1001
      %v1314 = vadd.f32 %v1282, %v1002
      %v1315 = vadd.f32 %v1283, %v1003
      %v1316 = vadd.f32 %v1284, %v1004
      %v1317 = vadd.f32 %v1285, %v1005
      %v1318 = vadd.f32 %v1286, %v1006
      %v1319 = vadd.f32 %v1287, %v1007
      %v1320 = vadd.f32 %v1288, %v1008
      %v1321 = vadd.f32 %v1289, %v1009
      %v1322 = vadd.f32 %v1290, %v1010
      %v1323 = vadd.f32 %v1291, %v1011
      %v1324 = vadd.f32 %v1292, %v1012
      %v1325 = vadd.f32 %v1293, %v1013
      %v1326 = vadd.f32 %v1294, %v1014
      %v1327 = vadd.f32 %v1295, %v1015
      %v1328 = vadd.f32 %v1296, %v1016
      %v1329 = vadd.f32 %v1297, %v1017
      %v1330 = vadd.f32 %v1298, %v1018
      %v1331 = vadd.f32 %v1299, %v1019
      %v1332 = vadd.f32 %v1300, %v1020
      %v1333 = vadd.f32 %v1301, %v1021
      %v1334 = vadd.f32 %v1302, %v1022
      %v1335 = vadd.f32 %v1303, %v1023
      %v1336 = vadd.f32 %v1304, %v1024
      %v1337 = vadd.f32 %v1305, %v1025
      %v1338 = vadd.f32 %v1306, %v1026
      %v1339 = vadd.f32 %v1307, %v1027
      %v1340 = vadd.f32 %v1308, %v1028
      %v1341 = vadd.f32 %v1309, %v1029
      %s1342 = scalar_lea.vmem %s6, 64
      %v1343 = vld [vmem:[%s1342] sm:$0xf]
      %v1344 = vld [vmem:[%s1342 + $0x4] sm:$0xf]
      %v1345 = vld [vmem:[%s1342 + $0x8] sm:$0xf]
      %v1346 = vld [vmem:[%s1342 + $0xc] sm:$0xf]
      %v1347 = vld [vmem:[%s1342 + $0x10] sm:$0xf]
      %v1348 = vld [vmem:[%s1342 + $0x14] sm:$0xf]
      %v1349 = vld [vmem:[%s1342 + $0x18] sm:$0xf]
      %v1350 = vld [vmem:[%s1342 + $0x1c] sm:$0xf]
      %v1351 = vld [vmem:[%s1342 + $0x20] sm:$0xf]
      %v1352 = vld [vmem:[%s1342 + $0x24] sm:$0xf]
      %v1353 = vld [vmem:[%s1342 + $0x28] sm:$0xf]
      %v1354 = vld [vmem:[%s1342 + $0x2c] sm:$0xf]
      %v1355 = vld [vmem:[%s1342 + $0x30] sm:$0xf]
      %v1356 = vld [vmem:[%s1342 + $0x34] sm:$0xf]
      %v1357 = vld [vmem:[%s1342 + $0x38] sm:$0xf]
      %v1358 = vld [vmem:[%s1342 + $0x3c] sm:$0xf]
      %s1359 = scalar_lea.vmem %s7, 1
      %v1360 = vld [vmem:[%s1359] sm:$0x1]
      %v1361 = vpack.c.bf16 %v1311, %v1310
      %v1362 = vpack.c.bf16 %v1313, %v1312
      %v1363 = vpack.c.bf16 %v1315, %v1314
      %v1364 = vpack.c.bf16 %v1317, %v1316
      %v1365 = vpack.c.bf16 %v1319, %v1318
      %v1366 = vpack.c.bf16 %v1321, %v1320
      %v1367 = vpack.c.bf16 %v1323, %v1322
      %v1368 = vpack.c.bf16 %v1325, %v1324
      %v1369 = vpack.c.bf16 %v1327, %v1326
      %v1370 = vpack.c.bf16 %v1329, %v1328
      %v1371 = vpack.c.bf16 %v1331, %v1330
      %v1372 = vpack.c.bf16 %v1333, %v1332
      %v1373 = vpack.c.bf16 %v1335, %v1334
      %v1374 = vpack.c.bf16 %v1337, %v1336
      %v1375 = vpack.c.bf16 %v1339, %v1338
      %v1376 = vpack.c.bf16 %v1341, %v1340
      %v1378 = vlaneseq
      %v1379 = vshrl.u32 %v1378, 7
      %v1380 = vsub.s32 0, %v1379
      %v1381 = vrot.slane %v1360, %v1380
      %v1399 = vunpack.c.l.b16 %v1343
      %v1400 = vunpack.c.l.b16 %v1344
      %v1401 = vunpack.c.l.b16 %v1345
      %v1402 = vunpack.c.l.b16 %v1346
      %v1403 = vunpack.c.l.b16 %v1347
      %v1404 = vunpack.c.l.b16 %v1348
      %v1405 = vunpack.c.l.b16 %v1349
      %v1406 = vunpack.c.l.b16 %v1350
      %v1407 = vunpack.c.l.b16 %v1351
      %v1408 = vunpack.c.l.b16 %v1352
      %v1409 = vunpack.c.l.b16 %v1353
      %v1410 = vunpack.c.l.b16 %v1354
      %v1411 = vunpack.c.l.b16 %v1355
      %v1412 = vunpack.c.l.b16 %v1356
      %v1413 = vunpack.c.l.b16 %v1357
      %v1414 = vunpack.c.l.b16 %v1358
      %v1415 = vpack.c.b16 %v1400, %v1399
      %v1416 = vpack.c.b16 %v1402, %v1401
      %v1417 = vpack.c.b16 %v1404, %v1403
      %v1418 = vpack.c.b16 %v1406, %v1405
      %v1419 = vpack.c.b16 %v1408, %v1407
      %v1420 = vpack.c.b16 %v1410, %v1409
      %v1421 = vpack.c.b16 %v1412, %v1411
      %v1422 = vpack.c.b16 %v1414, %v1413
      %1431 = vmatprep.subr.bf16.mxu0 0
      %1432 = vmatpush1.bf16.msra.mxu0 %v1422
      %1433 = vmatprep.subr.bf16.mxu0 0
      %1434 = vmatpush1.bf16.msra.mxu0 %v1421
      %1435 = vmatprep.subr.bf16.mxu0 0
      %1436 = vmatpush1.bf16.msra.mxu0 %v1420
      %1437 = vmatprep.subr.bf16.mxu0 0
      %1438 = vmatpush1.bf16.msra.mxu0 %v1419
      %1439 = vmatprep.subr.bf16.mxu0 0
      %1440 = vmatpush1.bf16.msra.mxu0 %v1418
      %1441 = vmatprep.subr.bf16.mxu0 0
      %1442 = vmatpush1.bf16.msra.mxu0 %v1417
      %1443 = vmatprep.subr.bf16.mxu0 0
      %1444 = vmatpush1.bf16.msra.mxu0 %v1416
      %1445 = vmatprep.subr.bf16.mxu0 0
      %1446 = vmatpush1.bf16.msra.mxu0 %v1415
      %1447 = vmatprep.subr.bf16.mxu0 0
      %1448 = vmatpush2.bf16.msra.mxu0 0
      %1449 = vmatprep.subr.bf16.mxu0 0
      %1450 = vmatpush2.bf16.msra.mxu0 0
      %1451 = vmatprep.subr.bf16.mxu0 0
      %1452 = vmatpush2.bf16.msra.mxu0 0
      %1453 = vmatprep.subr.bf16.mxu0 0
      %1454 = vmatpush2.bf16.msra.mxu0 0
      %1455 = vmatprep.subr.bf16.mxu0 0
      %1456 = vmatpush2.bf16.msra.mxu0 0
      %1457 = vmatprep.subr.bf16.mxu0 0
      %1458 = vmatpush2.bf16.msra.mxu0 0
      %1459 = vmatprep.subr.bf16.mxu0 0
      %1460 = vmatpush2.bf16.msra.mxu0 0
      %1461 = vmatprep.subr.bf16.mxu0 0
      %1462 = vmatpush2.bf16.msra.mxu0 0
      %1463 = vmatprep.mubr.bf16.mxu0 0
      %1464 = vmatmul.mubr.bf16.gmra.mxu0 %v1361
      %v1465 = vpop.f32.mrf.mxu0
      %v1466 = vadd.f32 %v1381, %v1465
      %v1467 = vpop.f32.mrf.mxu0
      %v1468 = vpop.f32.mrf.mxu0
      %v1469 = vadd.f32 %v1381, %v1468
      %v1470 = vpop.f32.mrf.mxu0
      %1471 = vmatprep.mubr.bf16.mxu0 0
      %1472 = vmatmul.mubr.bf16.gmra.mxu0 %v1362
      %v1473 = vpop.f32.mrf.mxu0
      %v1474 = vadd.f32 %v1381, %v1473
      %v1475 = vpop.f32.mrf.mxu0
      %v1476 = vpop.f32.mrf.mxu0
      %v1477 = vadd.f32 %v1381, %v1476
      %v1478 = vpop.f32.mrf.mxu0
      %1479 = vmatprep.mubr.bf16.mxu0 0
      %1480 = vmatmul.mubr.bf16.gmra.mxu0 %v1363
      %v1481 = vpop.f32.mrf.mxu0
      %v1482 = vadd.f32 %v1381, %v1481
      %v1483 = vpop.f32.mrf.mxu0
      %v1484 = vpop.f32.mrf.mxu0
      %v1485 = vadd.f32 %v1381, %v1484
      %v1486 = vpop.f32.mrf.mxu0
      %1487 = vmatprep.mubr.bf16.mxu0 0
      %1488 = vmatmul.mubr.bf16.gmra.mxu0 %v1364
      %v1489 = vpop.f32.mrf.mxu0
      %v1490 = vadd.f32 %v1381, %v1489
      %v1491 = vpop.f32.mrf.mxu0
      %v1492 = vpop.f32.mrf.mxu0
      %v1493 = vadd.f32 %v1381, %v1492
      %v1494 = vpop.f32.mrf.mxu0
      %1495 = vmatprep.mubr.bf16.mxu0 0
      %1496 = vmatmul.mubr.bf16.gmra.mxu0 %v1365
      %v1497 = vpop.f32.mrf.mxu0
      %v1498 = vadd.f32 %v1381, %v1497
      %v1499 = vpop.f32.mrf.mxu0
      %v1500 = vpop.f32.mrf.mxu0
      %v1501 = vadd.f32 %v1381, %v1500
      %v1502 = vpop.f32.mrf.mxu0
      %1503 = vmatprep.mubr.bf16.mxu0 0
      %1504 = vmatmul.mubr.bf16.gmra.mxu0 %v1366
      %v1505 = vpop.f32.mrf.mxu0
      %v1506 = vadd.f32 %v1381, %v1505
      %v1507 = vpop.f32.mrf.mxu0
      %v1508 = vpop.f32.mrf.mxu0
      %v1509 = vadd.f32 %v1381, %v1508
      %v1510 = vpop.f32.mrf.mxu0
      %1511 = vmatprep.mubr.bf16.mxu0 0
      %1512 = vmatmul.mubr.bf16.gmra.mxu0 %v1367
      %v1513 = vpop.f32.mrf.mxu0
      %v1514 = vadd.f32 %v1381, %v1513
      %v1515 = vpop.f32.mrf.mxu0
      %v1516 = vpop.f32.mrf.mxu0
      %v1517 = vadd.f32 %v1381, %v1516
      %v1518 = vpop.f32.mrf.mxu0
      %1519 = vmatprep.mubr.bf16.mxu0 0
      %1520 = vmatmul.mubr.bf16.gmra.mxu0 %v1368
      %v1521 = vpop.f32.mrf.mxu0
      %v1522 = vadd.f32 %v1381, %v1521
      %v1523 = vpop.f32.mrf.mxu0
      %v1524 = vpop.f32.mrf.mxu0
      %v1525 = vadd.f32 %v1381, %v1524
      %v1526 = vpop.f32.mrf.mxu0
      %1527 = vmatprep.mubr.bf16.mxu0 0
      %1528 = vmatmul.mubr.bf16.gmra.mxu0 %v1369
      %v1529 = vpop.f32.mrf.mxu0
      %v1530 = vadd.f32 %v1381, %v1529
      %v1531 = vpop.f32.mrf.mxu0
      %v1532 = vpop.f32.mrf.mxu0
      %v1533 = vadd.f32 %v1381, %v1532
      %v1534 = vpop.f32.mrf.mxu0
      %1535 = vmatprep.mubr.bf16.mxu0 0
      %1536 = vmatmul.mubr.bf16.gmra.mxu0 %v1370
      %v1537 = vpop.f32.mrf.mxu0
      %v1538 = vadd.f32 %v1381, %v1537
      %v1539 = vpop.f32.mrf.mxu0
      %v1540 = vpop.f32.mrf.mxu0
      %v1541 = vadd.f32 %v1381, %v1540
      %v1542 = vpop.f32.mrf.mxu0
      %1543 = vmatprep.mubr.bf16.mxu0 0
      %1544 = vmatmul.mubr.bf16.gmra.mxu0 %v1371
      %v1545 = vpop.f32.mrf.mxu0
      %v1546 = vadd.f32 %v1381, %v1545
      %v1547 = vpop.f32.mrf.mxu0
      %v1548 = vpop.f32.mrf.mxu0
      %v1549 = vadd.f32 %v1381, %v1548
      %v1550 = vpop.f32.mrf.mxu0
      %1551 = vmatprep.mubr.bf16.mxu0 0
      %1552 = vmatmul.mubr.bf16.gmra.mxu0 %v1372
      %v1553 = vpop.f32.mrf.mxu0
      %v1554 = vadd.f32 %v1381, %v1553
      %v1555 = vpop.f32.mrf.mxu0
      %v1556 = vpop.f32.mrf.mxu0
      %v1557 = vadd.f32 %v1381, %v1556
      %v1558 = vpop.f32.mrf.mxu0
      %1559 = vmatprep.mubr.bf16.mxu0 0
      %1560 = vmatmul.mubr.bf16.gmra.mxu0 %v1373
      %v1561 = vpop.f32.mrf.mxu0
      %v1562 = vadd.f32 %v1381, %v1561
      %v1563 = vpop.f32.mrf.mxu0
      %v1564 = vpop.f32.mrf.mxu0
      %v1565 = vadd.f32 %v1381, %v1564
      %v1566 = vpop.f32.mrf.mxu0
      %1567 = vmatprep.mubr.bf16.mxu0 0
      %1568 = vmatmul.mubr.bf16.gmra.mxu0 %v1374
      %v1569 = vpop.f32.mrf.mxu0
      %v1570 = vadd.f32 %v1381, %v1569
      %v1571 = vpop.f32.mrf.mxu0
      %v1572 = vpop.f32.mrf.mxu0
      %v1573 = vadd.f32 %v1381, %v1572
      %v1574 = vpop.f32.mrf.mxu0
      %1575 = vmatprep.mubr.bf16.mxu0 0
      %1576 = vmatmul.mubr.bf16.gmra.mxu0 %v1375
      %v1577 = vpop.f32.mrf.mxu0
      %v1578 = vadd.f32 %v1381, %v1577
      %v1579 = vpop.f32.mrf.mxu0
      %v1580 = vpop.f32.mrf.mxu0
      %v1581 = vadd.f32 %v1381, %v1580
      %v1582 = vpop.f32.mrf.mxu0
      %1583 = vmatprep.mubr.bf16.mxu0 0
      %1584 = vmatmul.mubr.bf16.gmra.mxu0 %v1376
      %v1585 = vpop.f32.mrf.mxu0
      %v1586 = vadd.f32 %v1381, %v1585
      %v1587 = vpop.f32.mrf.mxu0
      %v1588 = vpop.f32.mrf.mxu0
      %v1589 = vadd.f32 %v1381, %v1588
      %v1590 = vpop.f32.mrf.mxu0
      %1591 = vdwg.mxu0
      %v1592 = vmax.f32 %v1466, 0.0
      %v1593 = vmax.f32 %v1469, 0.0
      %v1594 = vmax.f32 %v1474, 0.0
      %v1595 = vmax.f32 %v1477, 0.0
      %v1596 = vmax.f32 %v1482, 0.0
      %v1597 = vmax.f32 %v1485, 0.0
      %v1598 = vmax.f32 %v1490, 0.0
      %v1599 = vmax.f32 %v1493, 0.0
      %v1600 = vmax.f32 %v1498, 0.0
      %v1601 = vmax.f32 %v1501, 0.0
      %v1602 = vmax.f32 %v1506, 0.0
      %v1603 = vmax.f32 %v1509, 0.0
      %v1604 = vmax.f32 %v1514, 0.0
      %v1605 = vmax.f32 %v1517, 0.0
      %v1606 = vmax.f32 %v1522, 0.0
      %v1607 = vmax.f32 %v1525, 0.0
      %v1608 = vmax.f32 %v1530, 0.0
      %v1609 = vmax.f32 %v1533, 0.0
      %v1610 = vmax.f32 %v1538, 0.0
      %v1611 = vmax.f32 %v1541, 0.0
      %v1612 = vmax.f32 %v1546, 0.0
      %v1613 = vmax.f32 %v1549, 0.0
      %v1614 = vmax.f32 %v1554, 0.0
      %v1615 = vmax.f32 %v1557, 0.0
      %v1616 = vmax.f32 %v1562, 0.0
      %v1617 = vmax.f32 %v1565, 0.0
      %v1618 = vmax.f32 %v1570, 0.0
      %v1619 = vmax.f32 %v1573, 0.0
      %v1620 = vmax.f32 %v1578, 0.0
      %v1621 = vmax.f32 %v1581, 0.0
      %v1622 = vmax.f32 %v1586, 0.0
      %v1623 = vmax.f32 %v1589, 0.0
      %v1624 = vadd.f32 %v1592, %v1310
      %v1625 = vadd.f32 %v1593, %v1311
      %v1626 = vadd.f32 %v1594, %v1312
      %v1627 = vadd.f32 %v1595, %v1313
      %v1628 = vadd.f32 %v1596, %v1314
      %v1629 = vadd.f32 %v1597, %v1315
      %v1630 = vadd.f32 %v1598, %v1316
      %v1631 = vadd.f32 %v1599, %v1317
      %v1632 = vadd.f32 %v1600, %v1318
      %v1633 = vadd.f32 %v1601, %v1319
      %v1634 = vadd.f32 %v1602, %v1320
      %v1635 = vadd.f32 %v1603, %v1321
      %v1636 = vadd.f32 %v1604, %v1322
      %v1637 = vadd.f32 %v1605, %v1323
      %v1638 = vadd.f32 %v1606, %v1324
      %v1639 = vadd.f32 %v1607, %v1325
      %v1640 = vadd.f32 %v1608, %v1326
      %v1641 = vadd.f32 %v1609, %v1327
      %v1642 = vadd.f32 %v1610, %v1328
      %v1643 = vadd.f32 %v1611, %v1329
      %v1644 = vadd.f32 %v1612, %v1330
      %v1645 = vadd.f32 %v1613, %v1331
      %v1646 = vadd.f32 %v1614, %v1332
      %v1647 = vadd.f32 %v1615, %v1333
      %v1648 = vadd.f32 %v1616, %v1334
      %v1649 = vadd.f32 %v1617, %v1335
      %v1650 = vadd.f32 %v1618, %v1336
      %v1651 = vadd.f32 %v1619, %v1337
      %v1652 = vadd.f32 %v1620, %v1338
      %v1653 = vadd.f32 %v1621, %v1339
      %v1654 = vadd.f32 %v1622, %v1340
      %v1655 = vadd.f32 %v1623, %v1341
      %s1656 = scalar_lea.vmem %s6, 128
      %v1657 = vld [vmem:[%s1656] sm:$0xf]
      %v1658 = vld [vmem:[%s1656 + $0x4] sm:$0xf]
      %v1659 = vld [vmem:[%s1656 + $0x8] sm:$0xf]
      %v1660 = vld [vmem:[%s1656 + $0xc] sm:$0xf]
      %v1661 = vld [vmem:[%s1656 + $0x10] sm:$0xf]
      %v1662 = vld [vmem:[%s1656 + $0x14] sm:$0xf]
      %v1663 = vld [vmem:[%s1656 + $0x18] sm:$0xf]
      %v1664 = vld [vmem:[%s1656 + $0x1c] sm:$0xf]
      %v1665 = vld [vmem:[%s1656 + $0x20] sm:$0xf]
      %v1666 = vld [vmem:[%s1656 + $0x24] sm:$0xf]
      %v1667 = vld [vmem:[%s1656 + $0x28] sm:$0xf]
      %v1668 = vld [vmem:[%s1656 + $0x2c] sm:$0xf]
      %v1669 = vld [vmem:[%s1656 + $0x30] sm:$0xf]
      %v1670 = vld [vmem:[%s1656 + $0x34] sm:$0xf]
      %v1671 = vld [vmem:[%s1656 + $0x38] sm:$0xf]
      %v1672 = vld [vmem:[%s1656 + $0x3c] sm:$0xf]
      %s1673 = scalar_lea.vmem %s7, 2
      %v1674 = vld [vmem:[%s1673] sm:$0x1]
      %v1675 = vpack.c.bf16 %v1625, %v1624
      %v1676 = vpack.c.bf16 %v1627, %v1626
      %v1677 = vpack.c.bf16 %v1629, %v1628
      %v1678 = vpack.c.bf16 %v1631, %v1630
      %v1679 = vpack.c.bf16 %v1633, %v1632
      %v1680 = vpack.c.bf16 %v1635, %v1634
      %v1681 = vpack.c.bf16 %v1637, %v1636
      %v1682 = vpack.c.bf16 %v1639, %v1638
      %v1683 = vpack.c.bf16 %v1641, %v1640
      %v1684 = vpack.c.bf16 %v1643, %v1642
      %v1685 = vpack.c.bf16 %v1645, %v1644
      %v1686 = vpack.c.bf16 %v1647, %v1646
      %v1687 = vpack.c.bf16 %v1649, %v1648
      %v1688 = vpack.c.bf16 %v1651, %v1650
      %v1689 = vpack.c.bf16 %v1653, %v1652
      %v1690 = vpack.c.bf16 %v1655, %v1654
      %v1692 = vlaneseq
      %v1693 = vshrl.u32 %v1692, 7
      %v1694 = vsub.s32 0, %v1693
      %v1695 = vrot.slane %v1674, %v1694
      %v1713 = vunpack.c.l.b16 %v1657
      %v1714 = vunpack.c.l.b16 %v1658
      %v1715 = vunpack.c.l.b16 %v1659
      %v1716 = vunpack.c.l.b16 %v1660
      %v1717 = vunpack.c.l.b16 %v1661
      %v1718 = vunpack.c.l.b16 %v1662
      %v1719 = vunpack.c.l.b16 %v1663
      %v1720 = vunpack.c.l.b16 %v1664
      %v1721 = vunpack.c.l.b16 %v1665
      %v1722 = vunpack.c.l.b16 %v1666
      %v1723 = vunpack.c.l.b16 %v1667
      %v1724 = vunpack.c.l.b16 %v1668
      %v1725 = vunpack.c.l.b16 %v1669
      %v1726 = vunpack.c.l.b16 %v1670
      %v1727 = vunpack.c.l.b16 %v1671
      %v1728 = vunpack.c.l.b16 %v1672
      %v1729 = vpack.c.b16 %v1714, %v1713
      %v1730 = vpack.c.b16 %v1716, %v1715
      %v1731 = vpack.c.b16 %v1718, %v1717
      %v1732 = vpack.c.b16 %v1720, %v1719
      %v1733 = vpack.c.b16 %v1722, %v1721
      %v1734 = vpack.c.b16 %v1724, %v1723
      %v1735 = vpack.c.b16 %v1726, %v1725
      %v1736 = vpack.c.b16 %v1728, %v1727
      %1745 = vmatprep.subr.bf16.mxu0 0
      %1746 = vmatpush1.bf16.msra.mxu0 %v1736
      %1747 = vmatprep.subr.bf16.mxu0 0
      %1748 = vmatpush1.bf16.msra.mxu0 %v1735
      %1749 = vmatprep.subr.bf16.mxu0 0
      %1750 = vmatpush1.bf16.msra.mxu0 %v1734
      %1751 = vmatprep.subr.bf16.mxu0 0
      %1752 = vmatpush1.bf16.msra.mxu0 %v1733
      %1753 = vmatprep.subr.bf16.mxu0 0
      %1754 = vmatpush1.bf16.msra.mxu0 %v1732
      %1755 = vmatprep.subr.bf16.mxu0 0
      %1756 = vmatpush1.bf16.msra.mxu0 %v1731
      %1757 = vmatprep.subr.bf16.mxu0 0
      %1758 = vmatpush1.bf16.msra.mxu0 %v1730
      %1759 = vmatprep.subr.bf16.mxu0 0
      %1760 = vmatpush1.bf16.msra.mxu0 %v1729
      %1761 = vmatprep.subr.bf16.mxu0 0
      %1762 = vmatpush2.bf16.msra.mxu0 0
      %1763 = vmatprep.subr.bf16.mxu0 0
      %1764 = vmatpush2.bf16.msra.mxu0 0
      %1765 = vmatprep.subr.bf16.mxu0 0
      %1766 = vmatpush2.bf16.msra.mxu0 0
      %1767 = vmatprep.subr.bf16.mxu0 0
      %1768 = vmatpush2.bf16.msra.mxu0 0
      %1769 = vmatprep.subr.bf16.mxu0 0
      %1770 = vmatpush2.bf16.msra.mxu0 0
      %1771 = vmatprep.subr.bf16.mxu0 0
      %1772 = vmatpush2.bf16.msra.mxu0 0
      %1773 = vmatprep.subr.bf16.mxu0 0
      %1774 = vmatpush2.bf16.msra.mxu0 0
      %1775 = vmatprep.subr.bf16.mxu0 0
      %1776 = vmatpush2.bf16.msra.mxu0 0
      %1777 = vmatprep.mubr.bf16.mxu0 0
      %1778 = vmatmul.mubr.bf16.gmra.mxu0 %v1675
      %v1779 = vpop.f32.mrf.mxu0
      %v1780 = vadd.f32 %v1695, %v1779
      %v1781 = vpop.f32.mrf.mxu0
      %v1782 = vpop.f32.mrf.mxu0
      %v1783 = vadd.f32 %v1695, %v1782
      %v1784 = vpop.f32.mrf.mxu0
      %1785 = vmatprep.mubr.bf16.mxu0 0
      %1786 = vmatmul.mubr.bf16.gmra.mxu0 %v1676
      %v1787 = vpop.f32.mrf.mxu0
      %v1788 = vadd.f32 %v1695, %v1787
      %v1789 = vpop.f32.mrf.mxu0
      %v1790 = vpop.f32.mrf.mxu0
      %v1791 = vadd.f32 %v1695, %v1790
      %v1792 = vpop.f32.mrf.mxu0
      %1793 = vmatprep.mubr.bf16.mxu0 0
      %1794 = vmatmul.mubr.bf16.gmra.mxu0 %v1677
      %v1795 = vpop.f32.mrf.mxu0
      %v1796 = vadd.f32 %v1695, %v1795
      %v1797 = vpop.f32.mrf.mxu0
      %v1798 = vpop.f32.mrf.mxu0
      %v1799 = vadd.f32 %v1695, %v1798
      %v1800 = vpop.f32.mrf.mxu0
      %1801 = vmatprep.mubr.bf16.mxu0 0
      %1802 = vmatmul.mubr.bf16.gmra.mxu0 %v1678
      %v1803 = vpop.f32.mrf.mxu0
      %v1804 = vadd.f32 %v1695, %v1803
      %v1805 = vpop.f32.mrf.mxu0
      %v1806 = vpop.f32.mrf.mxu0
      %v1807 = vadd.f32 %v1695, %v1806
      %v1808 = vpop.f32.mrf.mxu0
      %1809 = vmatprep.mubr.bf16.mxu0 0
      %1810 = vmatmul.mubr.bf16.gmra.mxu0 %v1679
      %v1811 = vpop.f32.mrf.mxu0
      %v1812 = vadd.f32 %v1695, %v1811
      %v1813 = vpop.f32.mrf.mxu0
      %v1814 = vpop.f32.mrf.mxu0
      %v1815 = vadd.f32 %v1695, %v1814
      %v1816 = vpop.f32.mrf.mxu0
      %1817 = vmatprep.mubr.bf16.mxu0 0
      %1818 = vmatmul.mubr.bf16.gmra.mxu0 %v1680
      %v1819 = vpop.f32.mrf.mxu0
      %v1820 = vadd.f32 %v1695, %v1819
      %v1821 = vpop.f32.mrf.mxu0
      %v1822 = vpop.f32.mrf.mxu0
      %v1823 = vadd.f32 %v1695, %v1822
      %v1824 = vpop.f32.mrf.mxu0
      %1825 = vmatprep.mubr.bf16.mxu0 0
      %1826 = vmatmul.mubr.bf16.gmra.mxu0 %v1681
      %v1827 = vpop.f32.mrf.mxu0
      %v1828 = vadd.f32 %v1695, %v1827
      %v1829 = vpop.f32.mrf.mxu0
      %v1830 = vpop.f32.mrf.mxu0
      %v1831 = vadd.f32 %v1695, %v1830
      %v1832 = vpop.f32.mrf.mxu0
      %1833 = vmatprep.mubr.bf16.mxu0 0
      %1834 = vmatmul.mubr.bf16.gmra.mxu0 %v1682
      %v1835 = vpop.f32.mrf.mxu0
      %v1836 = vadd.f32 %v1695, %v1835
      %v1837 = vpop.f32.mrf.mxu0
      %v1838 = vpop.f32.mrf.mxu0
      %v1839 = vadd.f32 %v1695, %v1838
      %v1840 = vpop.f32.mrf.mxu0
      %1841 = vmatprep.mubr.bf16.mxu0 0
      %1842 = vmatmul.mubr.bf16.gmra.mxu0 %v1683
      %v1843 = vpop.f32.mrf.mxu0
      %v1844 = vadd.f32 %v1695, %v1843
      %v1845 = vpop.f32.mrf.mxu0
      %v1846 = vpop.f32.mrf.mxu0
      %v1847 = vadd.f32 %v1695, %v1846
      %v1848 = vpop.f32.mrf.mxu0
      %1849 = vmatprep.mubr.bf16.mxu0 0
      %1850 = vmatmul.mubr.bf16.gmra.mxu0 %v1684
      %v1851 = vpop.f32.mrf.mxu0
      %v1852 = vadd.f32 %v1695, %v1851
      %v1853 = vpop.f32.mrf.mxu0
      %v1854 = vpop.f32.mrf.mxu0
      %v1855 = vadd.f32 %v1695, %v1854
      %v1856 = vpop.f32.mrf.mxu0
      %1857 = vmatprep.mubr.bf16.mxu0 0
      %1858 = vmatmul.mubr.bf16.gmra.mxu0 %v1685
      %v1859 = vpop.f32.mrf.mxu0
      %v1860 = vadd.f32 %v1695, %v1859
      %v1861 = vpop.f32.mrf.mxu0
      %v1862 = vpop.f32.mrf.mxu0
      %v1863 = vadd.f32 %v1695, %v1862
      %v1864 = vpop.f32.mrf.mxu0
      %1865 = vmatprep.mubr.bf16.mxu0 0
      %1866 = vmatmul.mubr.bf16.gmra.mxu0 %v1686
      %v1867 = vpop.f32.mrf.mxu0
      %v1868 = vadd.f32 %v1695, %v1867
      %v1869 = vpop.f32.mrf.mxu0
      %v1870 = vpop.f32.mrf.mxu0
      %v1871 = vadd.f32 %v1695, %v1870
      %v1872 = vpop.f32.mrf.mxu0
      %1873 = vmatprep.mubr.bf16.mxu0 0
      %1874 = vmatmul.mubr.bf16.gmra.mxu0 %v1687
      %v1875 = vpop.f32.mrf.mxu0
      %v1876 = vadd.f32 %v1695, %v1875
      %v1877 = vpop.f32.mrf.mxu0
      %v1878 = vpop.f32.mrf.mxu0
      %v1879 = vadd.f32 %v1695, %v1878
      %v1880 = vpop.f32.mrf.mxu0
      %1881 = vmatprep.mubr.bf16.mxu0 0
      %1882 = vmatmul.mubr.bf16.gmra.mxu0 %v1688
      %v1883 = vpop.f32.mrf.mxu0
      %v1884 = vadd.f32 %v1695, %v1883
      %v1885 = vpop.f32.mrf.mxu0
      %v1886 = vpop.f32.mrf.mxu0
      %v1887 = vadd.f32 %v1695, %v1886
      %v1888 = vpop.f32.mrf.mxu0
      %1889 = vmatprep.mubr.bf16.mxu0 0
      %1890 = vmatmul.mubr.bf16.gmra.mxu0 %v1689
      %v1891 = vpop.f32.mrf.mxu0
      %v1892 = vadd.f32 %v1695, %v1891
      %v1893 = vpop.f32.mrf.mxu0
      %v1894 = vpop.f32.mrf.mxu0
      %v1895 = vadd.f32 %v1695, %v1894
      %v1896 = vpop.f32.mrf.mxu0
      %1897 = vmatprep.mubr.bf16.mxu0 0
      %1898 = vmatmul.mubr.bf16.gmra.mxu0 %v1690
      %v1899 = vpop.f32.mrf.mxu0
      %v1900 = vadd.f32 %v1695, %v1899
      %v1901 = vpop.f32.mrf.mxu0
      %v1902 = vpop.f32.mrf.mxu0
      %v1903 = vadd.f32 %v1695, %v1902
      %v1904 = vpop.f32.mrf.mxu0
      %1905 = vdwg.mxu0
      %v1906 = vmax.f32 %v1780, 0.0
      %v1907 = vmax.f32 %v1783, 0.0
      %v1908 = vmax.f32 %v1788, 0.0
      %v1909 = vmax.f32 %v1791, 0.0
      %v1910 = vmax.f32 %v1796, 0.0
      %v1911 = vmax.f32 %v1799, 0.0
      %v1912 = vmax.f32 %v1804, 0.0
      %v1913 = vmax.f32 %v1807, 0.0
      %v1914 = vmax.f32 %v1812, 0.0
      %v1915 = vmax.f32 %v1815, 0.0
      %v1916 = vmax.f32 %v1820, 0.0
      %v1917 = vmax.f32 %v1823, 0.0
      %v1918 = vmax.f32 %v1828, 0.0
      %v1919 = vmax.f32 %v1831, 0.0
      %v1920 = vmax.f32 %v1836, 0.0
      %v1921 = vmax.f32 %v1839, 0.0
      %v1922 = vmax.f32 %v1844, 0.0
      %v1923 = vmax.f32 %v1847, 0.0
      %v1924 = vmax.f32 %v1852, 0.0
      %v1925 = vmax.f32 %v1855, 0.0
      %v1926 = vmax.f32 %v1860, 0.0
      %v1927 = vmax.f32 %v1863, 0.0
      %v1928 = vmax.f32 %v1868, 0.0
      %v1929 = vmax.f32 %v1871, 0.0
      %v1930 = vmax.f32 %v1876, 0.0
      %v1931 = vmax.f32 %v1879, 0.0
      %v1932 = vmax.f32 %v1884, 0.0
      %v1933 = vmax.f32 %v1887, 0.0
      %v1934 = vmax.f32 %v1892, 0.0
      %v1935 = vmax.f32 %v1895, 0.0
      %v1936 = vmax.f32 %v1900, 0.0
      %v1937 = vmax.f32 %v1903, 0.0
      %v1938 = vadd.f32 %v1906, %v1624
      %v1939 = vadd.f32 %v1907, %v1625
      %v1940 = vadd.f32 %v1908, %v1626
      %v1941 = vadd.f32 %v1909, %v1627
      %v1942 = vadd.f32 %v1910, %v1628
      %v1943 = vadd.f32 %v1911, %v1629
      %v1944 = vadd.f32 %v1912, %v1630
      %v1945 = vadd.f32 %v1913, %v1631
      %v1946 = vadd.f32 %v1914, %v1632
      %v1947 = vadd.f32 %v1915, %v1633
      %v1948 = vadd.f32 %v1916, %v1634
      %v1949 = vadd.f32 %v1917, %v1635
      %v1950 = vadd.f32 %v1918, %v1636
      %v1951 = vadd.f32 %v1919, %v1637
      %v1952 = vadd.f32 %v1920, %v1638
      %v1953 = vadd.f32 %v1921, %v1639
      %v1954 = vadd.f32 %v1922, %v1640
      %v1955 = vadd.f32 %v1923, %v1641
      %v1956 = vadd.f32 %v1924, %v1642
      %v1957 = vadd.f32 %v1925, %v1643
      %v1958 = vadd.f32 %v1926, %v1644
      %v1959 = vadd.f32 %v1927, %v1645
      %v1960 = vadd.f32 %v1928, %v1646
      %v1961 = vadd.f32 %v1929, %v1647
      %v1962 = vadd.f32 %v1930, %v1648
      %v1963 = vadd.f32 %v1931, %v1649
      %v1964 = vadd.f32 %v1932, %v1650
      %v1965 = vadd.f32 %v1933, %v1651
      %v1966 = vadd.f32 %v1934, %v1652
      %v1967 = vadd.f32 %v1935, %v1653
      %v1968 = vadd.f32 %v1936, %v1654
      %v1969 = vadd.f32 %v1937, %v1655
      %v1970 = vpack.c.bf16 %v1939, %v1938
      %v1971 = vpack.c.bf16 %v1941, %v1940
      %v1972 = vpack.c.bf16 %v1943, %v1942
      %v1973 = vpack.c.bf16 %v1945, %v1944
      %v1974 = vpack.c.bf16 %v1947, %v1946
      %v1975 = vpack.c.bf16 %v1949, %v1948
      %v1976 = vpack.c.bf16 %v1951, %v1950
      %v1977 = vpack.c.bf16 %v1953, %v1952
      %v1978 = vpack.c.bf16 %v1955, %v1954
      %v1979 = vpack.c.bf16 %v1957, %v1956
      %v1980 = vpack.c.bf16 %v1959, %v1958
      %v1981 = vpack.c.bf16 %v1961, %v1960
      %v1982 = vpack.c.bf16 %v1963, %v1962
      %v1983 = vpack.c.bf16 %v1965, %v1964
      %v1984 = vpack.c.bf16 %v1967, %v1966
      %v1985 = vpack.c.bf16 %v1969, %v1968
      %v1986 = vld [vmem:[%s8] sm:$0xff]
      %v1987 = vld [vmem:[%s8 + $0x8] sm:$0xff]
      %v1988 = vld [vmem:[%s8 + $0x10] sm:$0xff]
      %v1989 = vld [vmem:[%s8 + $0x18] sm:$0xff]
      %v1990 = vld [vmem:[%s8 + $0x20] sm:$0xff]
      %v1991 = vld [vmem:[%s8 + $0x28] sm:$0xff]
      %v1992 = vld [vmem:[%s8 + $0x30] sm:$0xff]
      %v1993 = vld [vmem:[%s8 + $0x38] sm:$0xff]
      %v1994 = vld [vmem:[%s8 + $0x40] sm:$0xff]
      %v1995 = vld [vmem:[%s8 + $0x48] sm:$0xff]
      %v1996 = vld [vmem:[%s8 + $0x50] sm:$0xff]
      %v1997 = vld [vmem:[%s8 + $0x58] sm:$0xff]
      %v1998 = vld [vmem:[%s8 + $0x60] sm:$0xff]
      %v1999 = vld [vmem:[%s8 + $0x68] sm:$0xff]
      %v2000 = vld [vmem:[%s8 + $0x70] sm:$0xff]
      %v2001 = vld [vmem:[%s8 + $0x78] sm:$0xff]
      %v2002 = vld [vmem:[%s9] sm:$0x3]
      %v2004 = vlaneseq
      %v2005 = vshrl.u32 %v2004, 7
      %v2006 = vsub.s32 0, %v2005
      %v2007 = vrot.slane %v2002, %v2006
      %v2008 = vlaneseq
      %v2009 = vshrl.u32 %v2008, 7
      %v2010 = vsub.s32 1, %v2009
      %v2011 = vrot.slane %v2002, %v2010
      %v2030 = vunpack.c.l.b16 %v1986
      %v2031 = vunpack.c.h.b16 %v1986
      %v2032 = vunpack.c.l.b16 %v1987
      %v2033 = vunpack.c.h.b16 %v1987
      %v2034 = vunpack.c.l.b16 %v1988
      %v2035 = vunpack.c.h.b16 %v1988
      %v2036 = vunpack.c.l.b16 %v1989
      %v2037 = vunpack.c.h.b16 %v1989
      %v2038 = vunpack.c.l.b16 %v1990
      %v2039 = vunpack.c.h.b16 %v1990
      %v2040 = vunpack.c.l.b16 %v1991
      %v2041 = vunpack.c.h.b16 %v1991
      %v2042 = vunpack.c.l.b16 %v1992
      %v2043 = vunpack.c.h.b16 %v1992
      %v2044 = vunpack.c.l.b16 %v1993
      %v2045 = vunpack.c.h.b16 %v1993
      %v2046 = vunpack.c.l.b16 %v1994
      %v2047 = vunpack.c.h.b16 %v1994
      %v2048 = vunpack.c.l.b16 %v1995
      %v2049 = vunpack.c.h.b16 %v1995
      %v2050 = vunpack.c.l.b16 %v1996
      %v2051 = vunpack.c.h.b16 %v1996
      %v2052 = vunpack.c.l.b16 %v1997
      %v2053 = vunpack.c.h.b16 %v1997
      %v2054 = vunpack.c.l.b16 %v1998
      %v2055 = vunpack.c.h.b16 %v1998
      %v2056 = vunpack.c.l.b16 %v1999
      %v2057 = vunpack.c.h.b16 %v1999
      %v2058 = vunpack.c.l.b16 %v2000
      %v2059 = vunpack.c.h.b16 %v2000
      %v2060 = vunpack.c.l.b16 %v2001
      %v2061 = vunpack.c.h.b16 %v2001
      %v2062 = vpack.c.b16 %v2032, %v2030
      %v2063 = vpack.c.b16 %v2033, %v2031
      %v2064 = vpack.c.b16 %v2036, %v2034
      %v2065 = vpack.c.b16 %v2037, %v2035
      %v2066 = vpack.c.b16 %v2040, %v2038
      %v2067 = vpack.c.b16 %v2041, %v2039
      %v2068 = vpack.c.b16 %v2044, %v2042
      %v2069 = vpack.c.b16 %v2045, %v2043
      %v2070 = vpack.c.b16 %v2048, %v2046
      %v2071 = vpack.c.b16 %v2049, %v2047
      %v2072 = vpack.c.b16 %v2052, %v2050
      %v2073 = vpack.c.b16 %v2053, %v2051
      %v2074 = vpack.c.b16 %v2056, %v2054
      %v2075 = vpack.c.b16 %v2057, %v2055
      %v2076 = vpack.c.b16 %v2060, %v2058
      %v2077 = vpack.c.b16 %v2061, %v2059
      %2094 = vmatprep.subr.bf16.mxu0 %v2077
      %2095 = vmatpush1.bf16.msra.mxu0 %v2076
      %2096 = vmatprep.subr.bf16.mxu0 %v2075
      %2097 = vmatpush1.bf16.msra.mxu0 %v2074
      %2098 = vmatprep.subr.bf16.mxu0 %v2073
      %2099 = vmatpush1.bf16.msra.mxu0 %v2072
      %2100 = vmatprep.subr.bf16.mxu0 %v2071
      %2101 = vmatpush1.bf16.msra.mxu0 %v2070
      %2102 = vmatprep.subr.bf16.mxu0 %v2069
      %2103 = vmatpush1.bf16.msra.mxu0 %v2068
      %2104 = vmatprep.subr.bf16.mxu0 %v2067
      %2105 = vmatpush1.bf16.msra.mxu0 %v2066
      %2106 = vmatprep.subr.bf16.mxu0 %v2065
      %2107 = vmatpush1.bf16.msra.mxu0 %v2064
      %2108 = vmatprep.subr.bf16.mxu0 %v2063
      %2109 = vmatpush1.bf16.msra.mxu0 %v2062
      %2110 = vmatprep.subr.bf16.mxu0 0
      %2111 = vmatpush2.bf16.msra.mxu0 0
      %2112 = vmatprep.subr.bf16.mxu0 0
      %2113 = vmatpush2.bf16.msra.mxu0 0
      %2114 = vmatprep.subr.bf16.mxu0 0
      %2115 = vmatpush2.bf16.msra.mxu0 0
      %2116 = vmatprep.subr.bf16.mxu0 0
      %2117 = vmatpush2.bf16.msra.mxu0 0
      %2118 = vmatprep.subr.bf16.mxu0 0
      %2119 = vmatpush2.bf16.msra.mxu0 0
      %2120 = vmatprep.subr.bf16.mxu0 0
      %2121 = vmatpush2.bf16.msra.mxu0 0
      %2122 = vmatprep.subr.bf16.mxu0 0
      %2123 = vmatpush2.bf16.msra.mxu0 0
      %2124 = vmatprep.subr.bf16.mxu0 0
      %2125 = vmatpush2.bf16.msra.mxu0 0
      %2126 = vmatprep.mubr.bf16.mxu0 0
      %2127 = vmatmul.mubr.bf16.gmra.mxu0 %v1970
      %v2128 = vpop.f32.mrf.mxu0
      %v2129 = vadd.f32 %v2007, %v2128
      %v2130 = vpop.f32.mrf.mxu0
      %v2131 = vadd.f32 %v2011, %v2130
      %v2132 = vpop.f32.mrf.mxu0
      %v2133 = vadd.f32 %v2007, %v2132
      %v2134 = vpop.f32.mrf.mxu0
      %v2135 = vadd.f32 %v2011, %v2134
      %2136 = vmatprep.mubr.bf16.mxu0 0
      %2137 = vmatmul.mubr.bf16.gmra.mxu0 %v1971
      %v2138 = vpop.f32.mrf.mxu0
      %v2139 = vadd.f32 %v2007, %v2138
      %v2140 = vpop.f32.mrf.mxu0
      %v2141 = vadd.f32 %v2011, %v2140
      %v2142 = vpop.f32.mrf.mxu0
      %v2143 = vadd.f32 %v2007, %v2142
      %v2144 = vpop.f32.mrf.mxu0
      %v2145 = vadd.f32 %v2011, %v2144
      %2146 = vmatprep.mubr.bf16.mxu0 0
      %2147 = vmatmul.mubr.bf16.gmra.mxu0 %v1972
      %v2148 = vpop.f32.mrf.mxu0
      %v2149 = vadd.f32 %v2007, %v2148
      %v2150 = vpop.f32.mrf.mxu0
      %v2151 = vadd.f32 %v2011, %v2150
      %v2152 = vpop.f32.mrf.mxu0
      %v2153 = vadd.f32 %v2007, %v2152
      %v2154 = vpop.f32.mrf.mxu0
      %v2155 = vadd.f32 %v2011, %v2154
      %2156 = vmatprep.mubr.bf16.mxu0 0
      %2157 = vmatmul.mubr.bf16.gmra.mxu0 %v1973
      %v2158 = vpop.f32.mrf.mxu0
      %v2159 = vadd.f32 %v2007, %v2158
      %v2160 = vpop.f32.mrf.mxu0
      %v2161 = vadd.f32 %v2011, %v2160
      %v2162 = vpop.f32.mrf.mxu0
      %v2163 = vadd.f32 %v2007, %v2162
      %v2164 = vpop.f32.mrf.mxu0
      %v2165 = vadd.f32 %v2011, %v2164
      %2166 = vmatprep.mubr.bf16.mxu0 0
      %2167 = vmatmul.mubr.bf16.gmra.mxu0 %v1974
      %v2168 = vpop.f32.mrf.mxu0
      %v2169 = vadd.f32 %v2007, %v2168
      %v2170 = vpop.f32.mrf.mxu0
      %v2171 = vadd.f32 %v2011, %v2170
      %v2172 = vpop.f32.mrf.mxu0
      %v2173 = vadd.f32 %v2007, %v2172
      %v2174 = vpop.f32.mrf.mxu0
      %v2175 = vadd.f32 %v2011, %v2174
      %2176 = vmatprep.mubr.bf16.mxu0 0
      %2177 = vmatmul.mubr.bf16.gmra.mxu0 %v1975
      %v2178 = vpop.f32.mrf.mxu0
      %v2179 = vadd.f32 %v2007, %v2178
      %v2180 = vpop.f32.mrf.mxu0
      %v2181 = vadd.f32 %v2011, %v2180
      %v2182 = vpop.f32.mrf.mxu0
      %v2183 = vadd.f32 %v2007, %v2182
      %v2184 = vpop.f32.mrf.mxu0
      %v2185 = vadd.f32 %v2011, %v2184
      %2186 = vmatprep.mubr.bf16.mxu0 0
      %2187 = vmatmul.mubr.bf16.gmra.mxu0 %v1976
      %v2188 = vpop.f32.mrf.mxu0
      %v2189 = vadd.f32 %v2007, %v2188
      %v2190 = vpop.f32.mrf.mxu0
      %v2191 = vadd.f32 %v2011, %v2190
      %v2192 = vpop.f32.mrf.mxu0
      %v2193 = vadd.f32 %v2007, %v2192
      %v2194 = vpop.f32.mrf.mxu0
      %v2195 = vadd.f32 %v2011, %v2194
      %2196 = vmatprep.mubr.bf16.mxu0 0
      %2197 = vmatmul.mubr.bf16.gmra.mxu0 %v1977
      %v2198 = vpop.f32.mrf.mxu0
      %v2199 = vadd.f32 %v2007, %v2198
      %v2200 = vpop.f32.mrf.mxu0
      %v2201 = vadd.f32 %v2011, %v2200
      %v2202 = vpop.f32.mrf.mxu0
      %v2203 = vadd.f32 %v2007, %v2202
      %v2204 = vpop.f32.mrf.mxu0
      %v2205 = vadd.f32 %v2011, %v2204
      %2206 = vmatprep.mubr.bf16.mxu0 0
      %2207 = vmatmul.mubr.bf16.gmra.mxu0 %v1978
      %v2208 = vpop.f32.mrf.mxu0
      %v2209 = vadd.f32 %v2007, %v2208
      %v2210 = vpop.f32.mrf.mxu0
      %v2211 = vadd.f32 %v2011, %v2210
      %v2212 = vpop.f32.mrf.mxu0
      %v2213 = vadd.f32 %v2007, %v2212
      %v2214 = vpop.f32.mrf.mxu0
      %v2215 = vadd.f32 %v2011, %v2214
      %2216 = vmatprep.mubr.bf16.mxu0 0
      %2217 = vmatmul.mubr.bf16.gmra.mxu0 %v1979
      %v2218 = vpop.f32.mrf.mxu0
      %v2219 = vadd.f32 %v2007, %v2218
      %v2220 = vpop.f32.mrf.mxu0
      %v2221 = vadd.f32 %v2011, %v2220
      %v2222 = vpop.f32.mrf.mxu0
      %v2223 = vadd.f32 %v2007, %v2222
      %v2224 = vpop.f32.mrf.mxu0
      %v2225 = vadd.f32 %v2011, %v2224
      %2226 = vmatprep.mubr.bf16.mxu0 0
      %2227 = vmatmul.mubr.bf16.gmra.mxu0 %v1980
      %v2228 = vpop.f32.mrf.mxu0
      %v2229 = vadd.f32 %v2007, %v2228
      %v2230 = vpop.f32.mrf.mxu0
      %v2231 = vadd.f32 %v2011, %v2230
      %v2232 = vpop.f32.mrf.mxu0
      %v2233 = vadd.f32 %v2007, %v2232
      %v2234 = vpop.f32.mrf.mxu0
      %v2235 = vadd.f32 %v2011, %v2234
      %2236 = vmatprep.mubr.bf16.mxu0 0
      %2237 = vmatmul.mubr.bf16.gmra.mxu0 %v1981
      %v2238 = vpop.f32.mrf.mxu0
      %v2239 = vadd.f32 %v2007, %v2238
      %v2240 = vpop.f32.mrf.mxu0
      %v2241 = vadd.f32 %v2011, %v2240
      %v2242 = vpop.f32.mrf.mxu0
      %v2243 = vadd.f32 %v2007, %v2242
      %v2244 = vpop.f32.mrf.mxu0
      %v2245 = vadd.f32 %v2011, %v2244
      %2246 = vmatprep.mubr.bf16.mxu0 0
      %2247 = vmatmul.mubr.bf16.gmra.mxu0 %v1982
      %v2248 = vpop.f32.mrf.mxu0
      %v2249 = vadd.f32 %v2007, %v2248
      %v2250 = vpop.f32.mrf.mxu0
      %v2251 = vadd.f32 %v2011, %v2250
      %v2252 = vpop.f32.mrf.mxu0
      %v2253 = vadd.f32 %v2007, %v2252
      %v2254 = vpop.f32.mrf.mxu0
      %v2255 = vadd.f32 %v2011, %v2254
      %2256 = vmatprep.mubr.bf16.mxu0 0
      %2257 = vmatmul.mubr.bf16.gmra.mxu0 %v1983
      %v2258 = vpop.f32.mrf.mxu0
      %v2259 = vadd.f32 %v2007, %v2258
      %v2260 = vpop.f32.mrf.mxu0
      %v2261 = vadd.f32 %v2011, %v2260
      %v2262 = vpop.f32.mrf.mxu0
      %v2263 = vadd.f32 %v2007, %v2262
      %v2264 = vpop.f32.mrf.mxu0
      %v2265 = vadd.f32 %v2011, %v2264
      %2266 = vmatprep.mubr.bf16.mxu0 0
      %2267 = vmatmul.mubr.bf16.gmra.mxu0 %v1984
      %v2268 = vpop.f32.mrf.mxu0
      %v2269 = vadd.f32 %v2007, %v2268
      %v2270 = vpop.f32.mrf.mxu0
      %v2271 = vadd.f32 %v2011, %v2270
      %v2272 = vpop.f32.mrf.mxu0
      %v2273 = vadd.f32 %v2007, %v2272
      %v2274 = vpop.f32.mrf.mxu0
      %v2275 = vadd.f32 %v2011, %v2274
      %2276 = vmatprep.mubr.bf16.mxu0 0
      %2277 = vmatmul.mubr.bf16.gmra.mxu0 %v1985
      %v2278 = vpop.f32.mrf.mxu0
      %v2279 = vadd.f32 %v2007, %v2278
      %v2280 = vpop.f32.mrf.mxu0
      %v2281 = vadd.f32 %v2011, %v2280
      %v2282 = vpop.f32.mrf.mxu0
      %v2283 = vadd.f32 %v2007, %v2282
      %v2284 = vpop.f32.mrf.mxu0
      %v2285 = vadd.f32 %v2011, %v2284
      %2286 = vdwg.mxu0
      %v2287 = vxor.u32 %v2129, 2147483648
      %v2288 = vxor.u32 %v2131, 2147483648
      %v2289 = vxor.u32 %v2133, 2147483648
      %v2290 = vxor.u32 %v2135, 2147483648
      %v2291 = vxor.u32 %v2139, 2147483648
      %v2292 = vxor.u32 %v2141, 2147483648
      %v2293 = vxor.u32 %v2143, 2147483648
      %v2294 = vxor.u32 %v2145, 2147483648
      %v2295 = vxor.u32 %v2149, 2147483648
      %v2296 = vxor.u32 %v2151, 2147483648
      %v2297 = vxor.u32 %v2153, 2147483648
      %v2298 = vxor.u32 %v2155, 2147483648
      %v2299 = vxor.u32 %v2159, 2147483648
      %v2300 = vxor.u32 %v2161, 2147483648
      %v2301 = vxor.u32 %v2163, 2147483648
      %v2302 = vxor.u32 %v2165, 2147483648
      %v2303 = vxor.u32 %v2169, 2147483648
      %v2304 = vxor.u32 %v2171, 2147483648
      %v2305 = vxor.u32 %v2173, 2147483648
      %v2306 = vxor.u32 %v2175, 2147483648
      %v2307 = vxor.u32 %v2179, 2147483648
      %v2308 = vxor.u32 %v2181, 2147483648
      %v2309 = vxor.u32 %v2183, 2147483648
      %v2310 = vxor.u32 %v2185, 2147483648
      %v2311 = vxor.u32 %v2189, 2147483648
      %v2312 = vxor.u32 %v2191, 2147483648
      %v2313 = vxor.u32 %v2193, 2147483648
      %v2314 = vxor.u32 %v2195, 2147483648
      %v2315 = vxor.u32 %v2199, 2147483648
      %v2316 = vxor.u32 %v2201, 2147483648
      %v2317 = vxor.u32 %v2203, 2147483648
      %v2318 = vxor.u32 %v2205, 2147483648
      %v2319 = vxor.u32 %v2209, 2147483648
      %v2320 = vxor.u32 %v2211, 2147483648
      %v2321 = vxor.u32 %v2213, 2147483648
      %v2322 = vxor.u32 %v2215, 2147483648
      %v2323 = vxor.u32 %v2219, 2147483648
      %v2324 = vxor.u32 %v2221, 2147483648
      %v2325 = vxor.u32 %v2223, 2147483648
      %v2326 = vxor.u32 %v2225, 2147483648
      %v2327 = vxor.u32 %v2229, 2147483648
      %v2328 = vxor.u32 %v2231, 2147483648
      %v2329 = vxor.u32 %v2233, 2147483648
      %v2330 = vxor.u32 %v2235, 2147483648
      %v2331 = vxor.u32 %v2239, 2147483648
      %v2332 = vxor.u32 %v2241, 2147483648
      %v2333 = vxor.u32 %v2243, 2147483648
      %v2334 = vxor.u32 %v2245, 2147483648
      %v2335 = vxor.u32 %v2249, 2147483648
      %v2336 = vxor.u32 %v2251, 2147483648
      %v2337 = vxor.u32 %v2253, 2147483648
      %v2338 = vxor.u32 %v2255, 2147483648
      %v2339 = vxor.u32 %v2259, 2147483648
      %v2340 = vxor.u32 %v2261, 2147483648
      %v2341 = vxor.u32 %v2263, 2147483648
      %v2342 = vxor.u32 %v2265, 2147483648
      %v2343 = vxor.u32 %v2269, 2147483648
      %v2344 = vxor.u32 %v2271, 2147483648
      %v2345 = vxor.u32 %v2273, 2147483648
      %v2346 = vxor.u32 %v2275, 2147483648
      %v2347 = vxor.u32 %v2279, 2147483648
      %v2348 = vxor.u32 %v2281, 2147483648
      %v2349 = vxor.u32 %v2283, 2147483648
      %v2350 = vxor.u32 %v2285, 2147483648
      %v2351 = vmul.f32 %v2287, 1.442695
      %v2352 = vpow.pop %v2351
      %v2353 = vmul.f32 %v2288, 1.442695
      %v2354 = vpow.pop %v2353
      %v2355 = vmul.f32 %v2289, 1.442695
      %v2356 = vpow.pop %v2355
      %v2357 = vmul.f32 %v2290, 1.442695
      %v2358 = vpow.pop %v2357
      %v2359 = vmul.f32 %v2291, 1.442695
      %v2360 = vpow.pop %v2359
      %v2361 = vmul.f32 %v2292, 1.442695
      %v2362 = vpow.pop %v2361
      %v2363 = vmul.f32 %v2293, 1.442695
      %v2364 = vpow.pop %v2363
      %v2365 = vmul.f32 %v2294, 1.442695
      %v2366 = vpow.pop %v2365
      %v2367 = vmul.f32 %v2295, 1.442695
      %v2368 = vpow.pop %v2367
      %v2369 = vmul.f32 %v2296, 1.442695
      %v2370 = vpow.pop %v2369
      %v2371 = vmul.f32 %v2297, 1.442695
      %v2372 = vpow.pop %v2371
      %v2373 = vmul.f32 %v2298, 1.442695
      %v2374 = vpow.pop %v2373
      %v2375 = vmul.f32 %v2299, 1.442695
      %v2376 = vpow.pop %v2375
      %v2377 = vmul.f32 %v2300, 1.442695
      %v2378 = vpow.pop %v2377
      %v2379 = vmul.f32 %v2301, 1.442695
      %v2380 = vpow.pop %v2379
      %v2381 = vmul.f32 %v2302, 1.442695
      %v2382 = vpow.pop %v2381
      %v2383 = vmul.f32 %v2303, 1.442695
      %v2384 = vpow.pop %v2383
      %v2385 = vmul.f32 %v2304, 1.442695
      %v2386 = vpow.pop %v2385
      %v2387 = vmul.f32 %v2305, 1.442695
      %v2388 = vpow.pop %v2387
      %v2389 = vmul.f32 %v2306, 1.442695
      %v2390 = vpow.pop %v2389
      %v2391 = vmul.f32 %v2307, 1.442695
      %v2392 = vpow.pop %v2391
      %v2393 = vmul.f32 %v2308, 1.442695
      %v2394 = vpow.pop %v2393
      %v2395 = vmul.f32 %v2309, 1.442695
      %v2396 = vpow.pop %v2395
      %v2397 = vmul.f32 %v2310, 1.442695
      %v2398 = vpow.pop %v2397
      %v2399 = vmul.f32 %v2311, 1.442695
      %v2400 = vpow.pop %v2399
      %v2401 = vmul.f32 %v2312, 1.442695
      %v2402 = vpow.pop %v2401
      %v2403 = vmul.f32 %v2313, 1.442695
      %v2404 = vpow.pop %v2403
      %v2405 = vmul.f32 %v2314, 1.442695
      %v2406 = vpow.pop %v2405
      %v2407 = vmul.f32 %v2315, 1.442695
      %v2408 = vpow.pop %v2407
      %v2409 = vmul.f32 %v2316, 1.442695
      %v2410 = vpow.pop %v2409
      %v2411 = vmul.f32 %v2317, 1.442695
      %v2412 = vpow.pop %v2411
      %v2413 = vmul.f32 %v2318, 1.442695
      %v2414 = vpow.pop %v2413
      %v2415 = vmul.f32 %v2319, 1.442695
      %v2416 = vpow.pop %v2415
      %v2417 = vmul.f32 %v2320, 1.442695
      %v2418 = vpow.pop %v2417
      %v2419 = vmul.f32 %v2321, 1.442695
      %v2420 = vpow.pop %v2419
      %v2421 = vmul.f32 %v2322, 1.442695
      %v2422 = vpow.pop %v2421
      %v2423 = vmul.f32 %v2323, 1.442695
      %v2424 = vpow.pop %v2423
      %v2425 = vmul.f32 %v2324, 1.442695
      %v2426 = vpow.pop %v2425
      %v2427 = vmul.f32 %v2325, 1.442695
      %v2428 = vpow.pop %v2427
      %v2429 = vmul.f32 %v2326, 1.442695
      %v2430 = vpow.pop %v2429
      %v2431 = vmul.f32 %v2327, 1.442695
      %v2432 = vpow.pop %v2431
      %v2433 = vmul.f32 %v2328, 1.442695
      %v2434 = vpow.pop %v2433
      %v2435 = vmul.f32 %v2329, 1.442695
      %v2436 = vpow.pop %v2435
      %v2437 = vmul.f32 %v2330, 1.442695
      %v2438 = vpow.pop %v2437
      %v2439 = vmul.f32 %v2331, 1.442695
      %v2440 = vpow.pop %v2439
      %v2441 = vmul.f32 %v2332, 1.442695
      %v2442 = vpow.pop %v2441
      %v2443 = vmul.f32 %v2333, 1.442695
      %v2444 = vpow.pop %v2443
      %v2445 = vmul.f32 %v2334, 1.442695
      %v2446 = vpow.pop %v2445
      %v2447 = vmul.f32 %v2335, 1.442695
      %v2448 = vpow.pop %v2447
      %v2449 = vmul.f32 %v2336, 1.442695
      %v2450 = vpow.pop %v2449
      %v2451 = vmul.f32 %v2337, 1.442695
      %v2452 = vpow.pop %v2451
      %v2453 = vmul.f32 %v2338, 1.442695
      %v2454 = vpow.pop %v2453
      %v2455 = vmul.f32 %v2339, 1.442695
      %v2456 = vpow.pop %v2455
      %v2457 = vmul.f32 %v2340, 1.442695
      %v2458 = vpow.pop %v2457
      %v2459 = vmul.f32 %v2341, 1.442695
      %v2460 = vpow.pop %v2459
      %v2461 = vmul.f32 %v2342, 1.442695
      %v2462 = vpow.pop %v2461
      %v2463 = vmul.f32 %v2343, 1.442695
      %v2464 = vpow.pop %v2463
      %v2465 = vmul.f32 %v2344, 1.442695
      %v2466 = vpow.pop %v2465
      %v2467 = vmul.f32 %v2345, 1.442695
      %v2468 = vpow.pop %v2467
      %v2469 = vmul.f32 %v2346, 1.442695
      %v2470 = vpow.pop %v2469
      %v2471 = vmul.f32 %v2347, 1.442695
      %v2472 = vpow.pop %v2471
      %v2473 = vmul.f32 %v2348, 1.442695
      %v2474 = vpow.pop %v2473
      %v2475 = vmul.f32 %v2349, 1.442695
      %v2476 = vpow.pop %v2475
      %v2477 = vmul.f32 %v2350, 1.442695
      %v2478 = vpow.pop %v2477
      %v2479 = vadd.f32 %v2352, 1.0
      %v2480 = vadd.f32 %v2354, 1.0
      %v2481 = vadd.f32 %v2356, 1.0
      %v2482 = vadd.f32 %v2358, 1.0
      %v2483 = vadd.f32 %v2360, 1.0
      %v2484 = vadd.f32 %v2362, 1.0
      %v2485 = vadd.f32 %v2364, 1.0
      %v2486 = vadd.f32 %v2366, 1.0
      %v2487 = vadd.f32 %v2368, 1.0
      %v2488 = vadd.f32 %v2370, 1.0
      %v2489 = vadd.f32 %v2372, 1.0
      %v2490 = vadd.f32 %v2374, 1.0
      %v2491 = vadd.f32 %v2376, 1.0
      %v2492 = vadd.f32 %v2378, 1.0
      %v2493 = vadd.f32 %v2380, 1.0
      %v2494 = vadd.f32 %v2382, 1.0
      %v2495 = vadd.f32 %v2384, 1.0
      %v2496 = vadd.f32 %v2386, 1.0
      %v2497 = vadd.f32 %v2388, 1.0
      %v2498 = vadd.f32 %v2390, 1.0
      %v2499 = vadd.f32 %v2392, 1.0
      %v2500 = vadd.f32 %v2394, 1.0
      %v2501 = vadd.f32 %v2396, 1.0
      %v2502 = vadd.f32 %v2398, 1.0
      %v2503 = vadd.f32 %v2400, 1.0
      %v2504 = vadd.f32 %v2402, 1.0
      %v2505 = vadd.f32 %v2404, 1.0
      %v2506 = vadd.f32 %v2406, 1.0
      %v2507 = vadd.f32 %v2408, 1.0
      %v2508 = vadd.f32 %v2410, 1.0
      %v2509 = vadd.f32 %v2412, 1.0
      %v2510 = vadd.f32 %v2414, 1.0
      %v2511 = vadd.f32 %v2416, 1.0
      %v2512 = vadd.f32 %v2418, 1.0
      %v2513 = vadd.f32 %v2420, 1.0
      %v2514 = vadd.f32 %v2422, 1.0
      %v2515 = vadd.f32 %v2424, 1.0
      %v2516 = vadd.f32 %v2426, 1.0
      %v2517 = vadd.f32 %v2428, 1.0
      %v2518 = vadd.f32 %v2430, 1.0
      %v2519 = vadd.f32 %v2432, 1.0
      %v2520 = vadd.f32 %v2434, 1.0
      %v2521 = vadd.f32 %v2436, 1.0
      %v2522 = vadd.f32 %v2438, 1.0
      %v2523 = vadd.f32 %v2440, 1.0
      %v2524 = vadd.f32 %v2442, 1.0
      %v2525 = vadd.f32 %v2444, 1.0
      %v2526 = vadd.f32 %v2446, 1.0
      %v2527 = vadd.f32 %v2448, 1.0
      %v2528 = vadd.f32 %v2450, 1.0
      %v2529 = vadd.f32 %v2452, 1.0
      %v2530 = vadd.f32 %v2454, 1.0
      %v2531 = vadd.f32 %v2456, 1.0
      %v2532 = vadd.f32 %v2458, 1.0
      %v2533 = vadd.f32 %v2460, 1.0
      %v2534 = vadd.f32 %v2462, 1.0
      %v2535 = vadd.f32 %v2464, 1.0
      %v2536 = vadd.f32 %v2466, 1.0
      %v2537 = vadd.f32 %v2468, 1.0
      %v2538 = vadd.f32 %v2470, 1.0
      %v2539 = vadd.f32 %v2472, 1.0
      %v2540 = vadd.f32 %v2474, 1.0
      %v2541 = vadd.f32 %v2476, 1.0
      %v2542 = vadd.f32 %v2478, 1.0
      %v2543 = vrcp.pop %v2479
      %v2544 = vmul.f32 1.0, %v2543
      %v2545 = vrcp.pop %v2480
      %v2546 = vmul.f32 1.0, %v2545
      %v2547 = vrcp.pop %v2481
      %v2548 = vmul.f32 1.0, %v2547
      %v2549 = vrcp.pop %v2482
      %v2550 = vmul.f32 1.0, %v2549
      %v2551 = vrcp.pop %v2483
      %v2552 = vmul.f32 1.0, %v2551
      %v2553 = vrcp.pop %v2484
      %v2554 = vmul.f32 1.0, %v2553
      %v2555 = vrcp.pop %v2485
      %v2556 = vmul.f32 1.0, %v2555
      %v2557 = vrcp.pop %v2486
      %v2558 = vmul.f32 1.0, %v2557
      %v2559 = vrcp.pop %v2487
      %v2560 = vmul.f32 1.0, %v2559
      %v2561 = vrcp.pop %v2488
      %v2562 = vmul.f32 1.0, %v2561
      %v2563 = vrcp.pop %v2489
      %v2564 = vmul.f32 1.0, %v2563
      %v2565 = vrcp.pop %v2490
      %v2566 = vmul.f32 1.0, %v2565
      %v2567 = vrcp.pop %v2491
      %v2568 = vmul.f32 1.0, %v2567
      %v2569 = vrcp.pop %v2492
      %v2570 = vmul.f32 1.0, %v2569
      %v2571 = vrcp.pop %v2493
      %v2572 = vmul.f32 1.0, %v2571
      %v2573 = vrcp.pop %v2494
      %v2574 = vmul.f32 1.0, %v2573
      %v2575 = vrcp.pop %v2495
      %v2576 = vmul.f32 1.0, %v2575
      %v2577 = vrcp.pop %v2496
      %v2578 = vmul.f32 1.0, %v2577
      %v2579 = vrcp.pop %v2497
      %v2580 = vmul.f32 1.0, %v2579
      %v2581 = vrcp.pop %v2498
      %v2582 = vmul.f32 1.0, %v2581
      %v2583 = vrcp.pop %v2499
      %v2584 = vmul.f32 1.0, %v2583
      %v2585 = vrcp.pop %v2500
      %v2586 = vmul.f32 1.0, %v2585
      %v2587 = vrcp.pop %v2501
      %v2588 = vmul.f32 1.0, %v2587
      %v2589 = vrcp.pop %v2502
      %v2590 = vmul.f32 1.0, %v2589
      %v2591 = vrcp.pop %v2503
      %v2592 = vmul.f32 1.0, %v2591
      %v2593 = vrcp.pop %v2504
      %v2594 = vmul.f32 1.0, %v2593
      %v2595 = vrcp.pop %v2505
      %v2596 = vmul.f32 1.0, %v2595
      %v2597 = vrcp.pop %v2506
      %v2598 = vmul.f32 1.0, %v2597
      %v2599 = vrcp.pop %v2507
      %v2600 = vmul.f32 1.0, %v2599
      %v2601 = vrcp.pop %v2508
      %v2602 = vmul.f32 1.0, %v2601
      %v2603 = vrcp.pop %v2509
      %v2604 = vmul.f32 1.0, %v2603
      %v2605 = vrcp.pop %v2510
      %v2606 = vmul.f32 1.0, %v2605
      %v2607 = vrcp.pop %v2511
      %v2608 = vmul.f32 1.0, %v2607
      %v2609 = vrcp.pop %v2512
      %v2610 = vmul.f32 1.0, %v2609
      %v2611 = vrcp.pop %v2513
      %v2612 = vmul.f32 1.0, %v2611
      %v2613 = vrcp.pop %v2514
      %v2614 = vmul.f32 1.0, %v2613
      %v2615 = vrcp.pop %v2515
      %v2616 = vmul.f32 1.0, %v2615
      %v2617 = vrcp.pop %v2516
      %v2618 = vmul.f32 1.0, %v2617
      %v2619 = vrcp.pop %v2517
      %v2620 = vmul.f32 1.0, %v2619
      %v2621 = vrcp.pop %v2518
      %v2622 = vmul.f32 1.0, %v2621
      %v2623 = vrcp.pop %v2519
      %v2624 = vmul.f32 1.0, %v2623
      %v2625 = vrcp.pop %v2520
      %v2626 = vmul.f32 1.0, %v2625
      %v2627 = vrcp.pop %v2521
      %v2628 = vmul.f32 1.0, %v2627
      %v2629 = vrcp.pop %v2522
      %v2630 = vmul.f32 1.0, %v2629
      %v2631 = vrcp.pop %v2523
      %v2632 = vmul.f32 1.0, %v2631
      %v2633 = vrcp.pop %v2524
      %v2634 = vmul.f32 1.0, %v2633
      %v2635 = vrcp.pop %v2525
      %v2636 = vmul.f32 1.0, %v2635
      %v2637 = vrcp.pop %v2526
      %v2638 = vmul.f32 1.0, %v2637
      %v2639 = vrcp.pop %v2527
      %v2640 = vmul.f32 1.0, %v2639
      %v2641 = vrcp.pop %v2528
      %v2642 = vmul.f32 1.0, %v2641
      %v2643 = vrcp.pop %v2529
      %v2644 = vmul.f32 1.0, %v2643
      %v2645 = vrcp.pop %v2530
      %v2646 = vmul.f32 1.0, %v2645
      %v2647 = vrcp.pop %v2531
      %v2648 = vmul.f32 1.0, %v2647
      %v2649 = vrcp.pop %v2532
      %v2650 = vmul.f32 1.0, %v2649
      %v2651 = vrcp.pop %v2533
      %v2652 = vmul.f32 1.0, %v2651
      %v2653 = vrcp.pop %v2534
      %v2654 = vmul.f32 1.0, %v2653
      %v2655 = vrcp.pop %v2535
      %v2656 = vmul.f32 1.0, %v2655
      %v2657 = vrcp.pop %v2536
      %v2658 = vmul.f32 1.0, %v2657
      %v2659 = vrcp.pop %v2537
      %v2660 = vmul.f32 1.0, %v2659
      %v2661 = vrcp.pop %v2538
      %v2662 = vmul.f32 1.0, %v2661
      %v2663 = vrcp.pop %v2539
      %v2664 = vmul.f32 1.0, %v2663
      %v2665 = vrcp.pop %v2540
      %v2666 = vmul.f32 1.0, %v2665
      %v2667 = vrcp.pop %v2541
      %v2668 = vmul.f32 1.0, %v2667
      %v2669 = vrcp.pop %v2542
      %v2670 = vmul.f32 1.0, %v2669
      %2671 = vst [vmem:[%s434] sm:$0xff] %v2544
      %2672 = vst [vmem:[%s434 + $0x8] sm:$0xff] %v2546
      %2673 = vst [vmem:[%s434 + $0x10] sm:$0xff] %v2548
      %2674 = vst [vmem:[%s434 + $0x18] sm:$0xff] %v2550
      %2675 = vst [vmem:[%s434 + $0x20] sm:$0xff] %v2552
      %2676 = vst [vmem:[%s434 + $0x28] sm:$0xff] %v2554
      %2677 = vst [vmem:[%s434 + $0x30] sm:$0xff] %v2556
      %2678 = vst [vmem:[%s434 + $0x38] sm:$0xff] %v2558
      %2679 = vst [vmem:[%s434 + $0x40] sm:$0xff] %v2560
      %2680 = vst [vmem:[%s434 + $0x48] sm:$0xff] %v2562
      %2681 = vst [vmem:[%s434 + $0x50] sm:$0xff] %v2564
      %2682 = vst [vmem:[%s434 + $0x58] sm:$0xff] %v2566
      %2683 = vst [vmem:[%s434 + $0x60] sm:$0xff] %v2568
      %2684 = vst [vmem:[%s434 + $0x68] sm:$0xff] %v2570
      %2685 = vst [vmem:[%s434 + $0x70] sm:$0xff] %v2572
      %2686 = vst [vmem:[%s434 + $0x78] sm:$0xff] %v2574
      %2687 = vst [vmem:[%s434 + $0x80] sm:$0xff] %v2576
      %2688 = vst [vmem:[%s434 + $0x88] sm:$0xff] %v2578
      %2689 = vst [vmem:[%s434 + $0x90] sm:$0xff] %v2580
      %2690 = vst [vmem:[%s434 + $0x98] sm:$0xff] %v2582
      %2691 = vst [vmem:[%s434 + $0xa0] sm:$0xff] %v2584
      %2692 = vst [vmem:[%s434 + $0xa8] sm:$0xff] %v2586
      %2693 = vst [vmem:[%s434 + $0xb0] sm:$0xff] %v2588
      %2694 = vst [vmem:[%s434 + $0xb8] sm:$0xff] %v2590
      %2695 = vst [vmem:[%s434 + $0xc0] sm:$0xff] %v2592
      %2696 = vst [vmem:[%s434 + $0xc8] sm:$0xff] %v2594
      %2697 = vst [vmem:[%s434 + $0xd0] sm:$0xff] %v2596
      %2698 = vst [vmem:[%s434 + $0xd8] sm:$0xff] %v2598
      %2699 = vst [vmem:[%s434 + $0xe0] sm:$0xff] %v2600
      %2700 = vst [vmem:[%s434 + $0xe8] sm:$0xff] %v2602
      %2701 = vst [vmem:[%s434 + $0xf0] sm:$0xff] %v2604
      %2702 = vst [vmem:[%s434 + $0xf8] sm:$0xff] %v2606
      %2703 = vst [vmem:[%s434 + $0x100] sm:$0xff] %v2608
      %2704 = vst [vmem:[%s434 + $0x108] sm:$0xff] %v2610
      %2705 = vst [vmem:[%s434 + $0x110] sm:$0xff] %v2612
      %2706 = vst [vmem:[%s434 + $0x118] sm:$0xff] %v2614
      %2707 = vst [vmem:[%s434 + $0x120] sm:$0xff] %v2616
      %2708 = vst [vmem:[%s434 + $0x128] sm:$0xff] %v2618
      %2709 = vst [vmem:[%s434 + $0x130] sm:$0xff] %v2620
      %2710 = vst [vmem:[%s434 + $0x138] sm:$0xff] %v2622
      %2711 = vst [vmem:[%s434 + $0x140] sm:$0xff] %v2624
      %2712 = vst [vmem:[%s434 + $0x148] sm:$0xff] %v2626
      %2713 = vst [vmem:[%s434 + $0x150] sm:$0xff] %v2628
      %2714 = vst [vmem:[%s434 + $0x158] sm:$0xff] %v2630
      %2715 = vst [vmem:[%s434 + $0x160] sm:$0xff] %v2632
      %2716 = vst [vmem:[%s434 + $0x168] sm:$0xff] %v2634
      %2717 = vst [vmem:[%s434 + $0x170] sm:$0xff] %v2636
      %2718 = vst [vmem:[%s434 + $0x178] sm:$0xff] %v2638
      %2719 = vst [vmem:[%s434 + $0x180] sm:$0xff] %v2640
      %2720 = vst [vmem:[%s434 + $0x188] sm:$0xff] %v2642
      %2721 = vst [vmem:[%s434 + $0x190] sm:$0xff] %v2644
      %2722 = vst [vmem:[%s434 + $0x198] sm:$0xff] %v2646
      %2723 = vst [vmem:[%s434 + $0x1a0] sm:$0xff] %v2648
      %2724 = vst [vmem:[%s434 + $0x1a8] sm:$0xff] %v2650
      %2725 = vst [vmem:[%s434 + $0x1b0] sm:$0xff] %v2652
      %2726 = vst [vmem:[%s434 + $0x1b8] sm:$0xff] %v2654
      %2727 = vst [vmem:[%s434 + $0x1c0] sm:$0xff] %v2656
      %2728 = vst [vmem:[%s434 + $0x1c8] sm:$0xff] %v2658
      %2729 = vst [vmem:[%s434 + $0x1d0] sm:$0xff] %v2660
      %2730 = vst [vmem:[%s434 + $0x1d8] sm:$0xff] %v2662
      %2731 = vst [vmem:[%s434 + $0x1e0] sm:$0xff] %v2664
      %2732 = vst [vmem:[%s434 + $0x1e8] sm:$0xff] %v2666
      %2733 = vst [vmem:[%s434 + $0x1f0] sm:$0xff] %v2668
      %2734 = vst [vmem:[%s434 + $0x1f8] sm:$0xff] %v2670
      %s2735 = smul.u32 32, %s22
      %p2736 = scmp.lt.s32.totalorder %s2735, 63
      %s2737 = scalar_select %p2736, %s2735, 63
      %s2738 = smul.addr %s2737, 2
      %s2739 = smul.addr %s2738, 8
      %s2740 = scalar_lea.vmem %s10, %s2739
      // Predicated region
      $region57: #{_fused_forward.1} parent=55 // pred_check
        %p2741 = pneg %p262
      $region58: #{_fused_forward.1} parent=55 // pred_check_branch
        %2743 = sbr.rel (%p2741) target = $region60
      $region59: #{_fused_forward.1} parent=55 // pred_region
        %s2744 = smul.u32 32, %s22
      $region60: #{_fused_forward.1} parent=55 // pred_fallthru
        _
    $region56: #{_fused_forward.1} parent=5 // pred_fallthru
      _
    %p2745 = scmp.le.s32.totalorder 2, %s17
    // Predicated region
    $region61: #{_fused_forward.1} parent=5 // pred_check
      %p2746 = pneg %p2745
    $region62: #{_fused_forward.1} parent=5 // pred_check_branch
      %2748 = sbr.rel (%p2746) target = $region64
    $region63: #{_fused_forward.1} parent=5 // pred_region
      %s2749 = ssub.s32 %s17, 2
      // Predicated region
      $region65: #{_fused_forward.1} parent=63 // pred_check
        %p2750 = pneg %p268
      $region66: #{_fused_forward.1} parent=63 // pred_check_branch
        %2752 = sbr.rel (%p2750) target = $region68
      $region67: #{_fused_forward.1} parent=63 // pred_region
        %s2753 = smul.u32 32, %s23
        %p2754 = scmp.lt.s32.totalorder %s2753, 63
        %s2755 = scalar_select %p2754, %s2753, 63
        %s2756 = smul.addr %s2755, 2
        %s2757 = smul.addr %s2756, 8
        %s2758 = scalar_lea.vmem %s10, %s2757
      $region68: #{_fused_forward.1} parent=63 // pred_fallthru
        _
    $region64: #{_fused_forward.1} parent=5 // pred_fallthru
      _
  $region6: #{_fused_forward.1} parent=0 // loop_footer
    %s21 = sadd.s32 1, %s17
  $region7: #{_fused_forward.1} parent=0 // loop_footer_branch
    %16 = sbr.rel target = $region3
  $region8: #{_fused_forward.1} parent=0 // loop_exit
    _

</llo_original>
